<compile_context>
chip_gen: v5e
topology: v5e:2x2
jax: 0.10.0
libtpu: 0.0.40
codegen_flags: <defaults>
</compile_context>

<pallas_src>
import math
import functools

import jax
import jax.numpy as jnp
from jax.experimental import pallas as pl
from jax.experimental.pallas import tpu as pltpu


def _round_up(n, m):
    return ((n + m - 1) // m) * m


def _pe_kernel(x_ref, o_ref, *, D, D_out, num_levels, R):
    # x_ref: (TN, R*D) tile; o_ref: (TN, R*D_out) tile. R points packed per row.
    TN = x_ref.shape[0]
    W = R * D_out

    x = x_ref[...].astype(jnp.float32)                       # (TN, R*D)

    # ---- Per-lane metadata on a single [1, W] row (negligible cost) --------
    lane = jax.lax.broadcasted_iota(jnp.int32, (1, W), 1)

    # jj = lane % D_out, sub = lane // D_out  (small R -> compare/subtract loop,
    # no vector integer division needed).
    jj = lane
    sub = lane - lane                                        # all-zeros int32
    for _ in range(1, R):
        m = jj >= D_out
        sub = jnp.where(m, sub + 1, sub)
        jj = jnp.where(m, jj - D_out, jj)

    is_id = jj < D                                           # identity lanes

    # cmp = jj % D via an exact float floor trick (values are >= 0.5/D away
    # from integers, rounding error ~1e-6, so the floor is exact).
    jj_f = jj.astype(jnp.float32)
    q = jnp.floor((jj_f + jnp.float32(0.5)) * jnp.float32(1.0 / D))
    cmp = jj - (q * jnp.float32(D)).astype(jnp.int32)
    comp = cmp + sub * D                                     # input lane feeding this output lane

    # sin-vs-cos mask: lane is a sin lane iff jj in [D + 2Dk, D + 2Dk + D).
    is_sin = jj < 0                                          # all-False
    for k in range(num_levels):
        lo = D + 2 * D * k
        is_sin = jnp.logical_or(is_sin,
                                jnp.logical_and(jj >= lo, jj < lo + D))

    # Per-lane frequency 2^k * pi, built exactly: doubling is exact in f32, so
    # this is bit-identical to float32(2**k) * float32(pi) of the reference.
    mult = jnp.where(is_id, jnp.float32(1.0), jnp.float32(math.pi))
    for k in range(1, num_levels):
        mult = jnp.where(jj >= D + 2 * D * k, mult * jnp.float32(2.0), mult)

    # ---- Lane-densify x (pure data movement, bit-exact) --------------------
    xt = jnp.broadcast_to(x[:, 0:1], (TN, W))
    for d in range(1, R * D):
        xt = jnp.where(comp == d, jnp.broadcast_to(x[:, d:d + 1], (TN, W)), xt)

    # ---- Full-width compute + single store ----------------------------------
    arg = xt * mult                                          # exact f32 multiply
    s = jnp.sin(arg)
    c = jnp.cos(arg)
    out = jnp.where(is_id, xt, jnp.where(is_sin, s, c))
    o_ref[...] = out.astype(o_ref.dtype)                     # one lane-dense store


def positional_encoding(x, num_levels=10, *, tile_rows=4096, out_dtype=None):
    """x: [N, D] float. Returns [N, D*(1 + 2*num_levels)], same order as torch.cat."""
    N, D = x.shape
    in_dtype = jnp.dtype(x.dtype)
    out_dtype = in_dtype if out_dtype is None else jnp.dtype(out_dtype)
    D_out = D * (1 + 2 * num_levels)

    # Pack R consecutive points per kernel row so the feature axis fills the
    # 128-lane vregs (R=2 -> 126/128 lanes for D=3, L=10).
    R = max(1, min(8, 128 // D_out))
    W = R * D_out
    Din = R * D

    def lane_pad(c):                      # VMEM lane padding to 128
        return _round_up(c, 128)

    def sublane(dt):                      # block second-minor alignment per dtype
        return {4: 8, 2: 16, 1: 32}.get(jnp.dtype(dt).itemsize, 8)

    align = max(sublane(in_dtype), sublane(out_dtype))

    # VMEM per packed row: double-buffered in+out tiles (lane-padded) plus
    # ~6 live full-tile f32 intermediates (xt / arg / sin / cos / out + slack).
    row_bytes = (2 * (lane_pad(Din) * in_dtype.itemsize
                      + lane_pad(W) * out_dtype.itemsize)
                 + 6 * lane_pad(W) * 4)
    budget = 20 * 1024 * 1024             # headroom under v7x's 32 MiB scoped VMEM
    tile_cap = max(align, (budget // row_bytes) // align * align)

    n_rows = -(-N // R)                   # packed rows needed
    n_rows_a = _round_up(max(n_rows, 1), align)

    tile = max(align, min(int(tile_rows), tile_cap, n_rows_a) // align * align)
    # Keep both v7x TensorCores busy: ensure >= 2 parallel grid steps when
    # there is enough work to split.
    if n_rows_a <= tile and n_rows_a >= 2 * align:
        tile = _round_up(-(-n_rows_a // 2), align)

    n_rows_pad = _round_up(n_rows_a, tile)
    grid = (n_rows_pad // tile,)
    N_pad = n_rows_pad * R

    x_p = x if N_pad == N else jnp.pad(x, ((0, N_pad - N), (0, 0)))
    x_packed = x_p.reshape(n_rows_pad, Din)        # free row-major repack

    kernel = functools.partial(_pe_kernel, D=D, D_out=D_out,
                               num_levels=num_levels, R=R)

    out_packed = pl.pallas_call(
        kernel,
        out_shape=jax.ShapeDtypeStruct((n_rows_pad, W), out_dtype),
        grid_spec=pl.GridSpec(
            grid=grid,
            # Minor dims (Din, W) equal the full array extents; sublane dim is
            # a multiple of the dtype alignment -> (8,128) rule satisfied.
            in_specs=[pl.BlockSpec((tile, Din), lambda i: (i, 0))],
            out_specs=pl.BlockSpec((tile, W), lambda i: (i, 0)),
        ),
        compiler_params=pltpu.CompilerParams(
            dimension_semantics=("parallel",),
        ),
        cost_estimate=pl.CostEstimate(
            flops=8 * N * D_out,
            transcendentals=2 * N * D_out,
            bytes_accessed=N * D * in_dtype.itemsize
                           + N * D_out * out_dtype.itemsize,
        ),
    )(x_packed)

    out = out_packed.reshape(N_pad, D_out)          # free row-major unpack
    return out[:N] if N_pad != N else out


def positional_encoding_ref(x, num_levels=10):
    freq_bands = (2.0 ** jnp.arange(num_levels).astype(jnp.float32)) * jnp.pi
    out = [x]
    for f in freq_bands:
        out.append(jnp.sin(x * f))
        out.append(jnp.cos(x * f))
    return jnp.concatenate(out, axis=-1)


if __name__ == "__main__":
    key = jax.random.PRNGKey(0)
    # Module defaults: input_dim=3, num_levels=10. NeRF-style normalized coords
    # in [-1, 1); deliberately non-tile-aligned point count (exercises padding,
    # the R=2 packing reshape, and the 2-step parallel grid).
    N, D, L = 250, 3, 10
    x = jax.random.uniform(key, (N, D), dtype=jnp.float32, minval=-1.0, maxval=1.0)

    out = jax.block_until_ready(positional_encoding(x, num_levels=L))
    ref = positional_encoding_ref(x, num_levels=L)

    assert out.shape == (N, D * (1 + 2 * L)), out.shape
    # Identity lanes are pure data movement -> must be bit-exact.
    assert jnp.array_equal(out[:, :D], x), "identity slab mismatch"
    # sin/cos arguments are bit-identical to the reference's f32 math; the only
    # difference source is the transcendental approximation itself (worst case
    # ~|arg| * 2^-23 at the top frequency band).
    max_err = float(jnp.max(jnp.abs(out - ref)))
    assert jnp.allclose(out, ref, atol=2e-4, rtol=2e-4), f"max_err={max_err}"

    print("KERNEL_OK")
</pallas_src>

<mosaic_0001>
module attributes {stable_mosaic.version = 11 : i64} {
  func.func @_pe_kernel(%arg0: i32, %arg1: memref<64x6xf32, #tpu.memory_space<vmem>>, %arg2: memref<64x126xf32, #tpu.memory_space<vmem>>) attributes {dimension_semantics = [#tpu.dimension_semantics<parallel>], iteration_bounds = array<i64: 2>, scalar_prefetch = 0 : i64, scratch_operands = 0 : i64, tpu.core_type = #tpu.core_type<tc>, window_params = [{transform_indices = @transform_0, window_bounds = array<i64: 64, 6>}, {transform_indices = @transform_1, window_bounds = array<i64: 64, 126>}]} {
    %c0 = arith.constant 0 : index
    %c0_0 = arith.constant 0 : index
    %0 = vector.load %arg1[%c0, %c0_0] : memref<64x6xf32, #tpu.memory_space<vmem>>, vector<64x6xf32>
    %1 = tpu.iota {dimensions = array<i32: 1>} : vector<1x126xi32>
    %2 = arith.subi %1, %1 : vector<1x126xi32>
    %c63_i32 = arith.constant 63 : i32
    %3 = vector.broadcast %c63_i32 : i32 to vector<1x126xi32>
    %4 = arith.cmpi sge, %1, %3 : vector<1x126xi32>
    %c1_i32 = arith.constant 1 : i32
    %5 = vector.broadcast %c1_i32 : i32 to vector<1x126xi32>
    %6 = arith.addi %2, %5 : vector<1x126xi32>
    %7 = arith.select %4, %6, %2 : vector<1x126xi1>, vector<1x126xi32>
    %c63_i32_1 = arith.constant 63 : i32
    %8 = vector.broadcast %c63_i32_1 : i32 to vector<1x126xi32>
    %9 = arith.subi %1, %8 : vector<1x126xi32>
    %10 = arith.select %4, %9, %1 : vector<1x126xi1>, vector<1x126xi32>
    %c3_i32 = arith.constant 3 : i32
    %11 = vector.broadcast %c3_i32 : i32 to vector<1x126xi32>
    %12 = arith.cmpi slt, %10, %11 : vector<1x126xi32>
    %13 = arith.sitofp %10 : vector<1x126xi32> to vector<1x126xf32>
    %cst = arith.constant 5.000000e-01 : f32
    %14 = vector.broadcast %cst : f32 to vector<1x126xf32>
    %15 = arith.addf %13, %14 : vector<1x126xf32>
    %cst_2 = arith.constant 0.333333343 : f32
    %16 = vector.broadcast %cst_2 : f32 to vector<1x126xf32>
    %17 = arith.mulf %15, %16 : vector<1x126xf32>
    %18 = math.floor %17 : vector<1x126xf32>
    %cst_3 = arith.constant 3.000000e+00 : f32
    %19 = vector.broadcast %cst_3 : f32 to vector<1x126xf32>
    %20 = arith.mulf %18, %19 : vector<1x126xf32>
    %21 = arith.fptosi %20 : vector<1x126xf32> to vector<1x126xi32>
    %22 = arith.subi %10, %21 : vector<1x126xi32>
    %c3_i32_4 = arith.constant 3 : i32
    %23 = vector.broadcast %c3_i32_4 : i32 to vector<1x126xi32>
    %24 = arith.muli %7, %23 : vector<1x126xi32>
    %25 = arith.addi %22, %24 : vector<1x126xi32>
    %c0_i32 = arith.constant 0 : i32
    %26 = vector.broadcast %c0_i32 : i32 to vector<1x126xi32>
    %27 = arith.cmpi slt, %10, %26 : vector<1x126xi32>
    %c3_i32_5 = arith.constant 3 : i32
    %28 = vector.broadcast %c3_i32_5 : i32 to vector<1x126xi32>
    %29 = arith.cmpi sge, %10, %28 : vector<1x126xi32>
    %c6_i32 = arith.constant 6 : i32
    %30 = vector.broadcast %c6_i32 : i32 to vector<1x126xi32>
    %31 = arith.cmpi slt, %10, %30 : vector<1x126xi32>
    %32 = arith.andi %29, %31 : vector<1x126xi1>
    %33 = arith.ori %27, %32 : vector<1x126xi1>
    %c9_i32 = arith.constant 9 : i32
    %34 = vector.broadcast %c9_i32 : i32 to vector<1x126xi32>
    %35 = arith.cmpi sge, %10, %34 : vector<1x126xi32>
    %c12_i32 = arith.constant 12 : i32
    %36 = vector.broadcast %c12_i32 : i32 to vector<1x126xi32>
    %37 = arith.cmpi slt, %10, %36 : vector<1x126xi32>
    %38 = arith.andi %35, %37 : vector<1x126xi1>
    %39 = arith.ori %33, %38 : vector<1x126xi1>
    %c15_i32 = arith.constant 15 : i32
    %40 = vector.broadcast %c15_i32 : i32 to vector<1x126xi32>
    %41 = arith.cmpi sge, %10, %40 : vector<1x126xi32>
    %c18_i32 = arith.constant 18 : i32
    %42 = vector.broadcast %c18_i32 : i32 to vector<1x126xi32>
    %43 = arith.cmpi slt, %10, %42 : vector<1x126xi32>
    %44 = arith.andi %41, %43 : vector<1x126xi1>
    %45 = arith.ori %39, %44 : vector<1x126xi1>
    %c21_i32 = arith.constant 21 : i32
    %46 = vector.broadcast %c21_i32 : i32 to vector<1x126xi32>
    %47 = arith.cmpi sge, %10, %46 : vector<1x126xi32>
    %c24_i32 = arith.constant 24 : i32
    %48 = vector.broadcast %c24_i32 : i32 to vector<1x126xi32>
    %49 = arith.cmpi slt, %10, %48 : vector<1x126xi32>
    %50 = arith.andi %47, %49 : vector<1x126xi1>
    %51 = arith.ori %45, %50 : vector<1x126xi1>
    %c27_i32 = arith.constant 27 : i32
    %52 = vector.broadcast %c27_i32 : i32 to vector<1x126xi32>
    %53 = arith.cmpi sge, %10, %52 : vector<1x126xi32>
    %c30_i32 = arith.constant 30 : i32
    %54 = vector.broadcast %c30_i32 : i32 to vector<1x126xi32>
    %55 = arith.cmpi slt, %10, %54 : vector<1x126xi32>
    %56 = arith.andi %53, %55 : vector<1x126xi1>
    %57 = arith.ori %51, %56 : vector<1x126xi1>
    %c33_i32 = arith.constant 33 : i32
    %58 = vector.broadcast %c33_i32 : i32 to vector<1x126xi32>
    %59 = arith.cmpi sge, %10, %58 : vector<1x126xi32>
    %c36_i32 = arith.constant 36 : i32
    %60 = vector.broadcast %c36_i32 : i32 to vector<1x126xi32>
    %61 = arith.cmpi slt, %10, %60 : vector<1x126xi32>
    %62 = arith.andi %59, %61 : vector<1x126xi1>
    %63 = arith.ori %57, %62 : vector<1x126xi1>
    %c39_i32 = arith.constant 39 : i32
    %64 = vector.broadcast %c39_i32 : i32 to vector<1x126xi32>
    %65 = arith.cmpi sge, %10, %64 : vector<1x126xi32>
    %c42_i32 = arith.constant 42 : i32
    %66 = vector.broadcast %c42_i32 : i32 to vector<1x126xi32>
    %67 = arith.cmpi slt, %10, %66 : vector<1x126xi32>
    %68 = arith.andi %65, %67 : vector<1x126xi1>
    %69 = arith.ori %63, %68 : vector<1x126xi1>
    %c45_i32 = arith.constant 45 : i32
    %70 = vector.broadcast %c45_i32 : i32 to vector<1x126xi32>
    %71 = arith.cmpi sge, %10, %70 : vector<1x126xi32>
    %c48_i32 = arith.constant 48 : i32
    %72 = vector.broadcast %c48_i32 : i32 to vector<1x126xi32>
    %73 = arith.cmpi slt, %10, %72 : vector<1x126xi32>
    %74 = arith.andi %71, %73 : vector<1x126xi1>
    %75 = arith.ori %69, %74 : vector<1x126xi1>
    %c51_i32 = arith.constant 51 : i32
    %76 = vector.broadcast %c51_i32 : i32 to vector<1x126xi32>
    %77 = arith.cmpi sge, %10, %76 : vector<1x126xi32>
    %c54_i32 = arith.constant 54 : i32
    %78 = vector.broadcast %c54_i32 : i32 to vector<1x126xi32>
    %79 = arith.cmpi slt, %10, %78 : vector<1x126xi32>
    %80 = arith.andi %77, %79 : vector<1x126xi1>
    %81 = arith.ori %75, %80 : vector<1x126xi1>
    %c57_i32 = arith.constant 57 : i32
    %82 = vector.broadcast %c57_i32 : i32 to vector<1x126xi32>
    %83 = arith.cmpi sge, %10, %82 : vector<1x126xi32>
    %c60_i32 = arith.constant 60 : i32
    %84 = vector.broadcast %c60_i32 : i32 to vector<1x126xi32>
    %85 = arith.cmpi slt, %10, %84 : vector<1x126xi32>
    %86 = arith.andi %83, %85 : vector<1x126xi1>
    %87 = arith.ori %81, %86 : vector<1x126xi1>
    %cst_6 = arith.constant 1.000000e+00 : f32
    %cst_7 = arith.constant 3.14159274 : f32
    %88 = vector.broadcast %cst_6 : f32 to vector<1x126xf32>
    %89 = vector.broadcast %cst_7 : f32 to vector<1x126xf32>
    %90 = arith.select %12, %88, %89 : vector<1x126xi1>, vector<1x126xf32>
    %c9_i32_8 = arith.constant 9 : i32
    %91 = vector.broadcast %c9_i32_8 : i32 to vector<1x126xi32>
    %92 = arith.cmpi sge, %10, %91 : vector<1x126xi32>
    %cst_9 = arith.constant 2.000000e+00 : f32
    %93 = vector.broadcast %cst_9 : f32 to vector<1x126xf32>
    %94 = arith.mulf %90, %93 : vector<1x126xf32>
    %95 = arith.select %92, %94, %90 : vector<1x126xi1>, vector<1x126xf32>
    %c15_i32_10 = arith.constant 15 : i32
    %96 = vector.broadcast %c15_i32_10 : i32 to vector<1x126xi32>
    %97 = arith.cmpi sge, %10, %96 : vector<1x126xi32>
    %cst_11 = arith.constant 2.000000e+00 : f32
    %98 = vector.broadcast %cst_11 : f32 to vector<1x126xf32>
    %99 = arith.mulf %95, %98 : vector<1x126xf32>
    %100 = arith.select %97, %99, %95 : vector<1x126xi1>, vector<1x126xf32>
    %c21_i32_12 = arith.constant 21 : i32
    %101 = vector.broadcast %c21_i32_12 : i32 to vector<1x126xi32>
    %102 = arith.cmpi sge, %10, %101 : vector<1x126xi32>
    %cst_13 = arith.constant 2.000000e+00 : f32
    %103 = vector.broadcast %cst_13 : f32 to vector<1x126xf32>
    %104 = arith.mulf %100, %103 : vector<1x126xf32>
    %105 = arith.select %102, %104, %100 : vector<1x126xi1>, vector<1x126xf32>
    %c27_i32_14 = arith.constant 27 : i32
    %106 = vector.broadcast %c27_i32_14 : i32 to vector<1x126xi32>
    %107 = arith.cmpi sge, %10, %106 : vector<1x126xi32>
    %cst_15 = arith.constant 2.000000e+00 : f32
    %108 = vector.broadcast %cst_15 : f32 to vector<1x126xf32>
    %109 = arith.mulf %105, %108 : vector<1x126xf32>
    %110 = arith.select %107, %109, %105 : vector<1x126xi1>, vector<1x126xf32>
    %c33_i32_16 = arith.constant 33 : i32
    %111 = vector.broadcast %c33_i32_16 : i32 to vector<1x126xi32>
    %112 = arith.cmpi sge, %10, %111 : vector<1x126xi32>
    %cst_17 = arith.constant 2.000000e+00 : f32
    %113 = vector.broadcast %cst_17 : f32 to vector<1x126xf32>
    %114 = arith.mulf %110, %113 : vector<1x126xf32>
    %115 = arith.select %112, %114, %110 : vector<1x126xi1>, vector<1x126xf32>
    %c39_i32_18 = arith.constant 39 : i32
    %116 = vector.broadcast %c39_i32_18 : i32 to vector<1x126xi32>
    %117 = arith.cmpi sge, %10, %116 : vector<1x126xi32>
    %cst_19 = arith.constant 2.000000e+00 : f32
    %118 = vector.broadcast %cst_19 : f32 to vector<1x126xf32>
    %119 = arith.mulf %115, %118 : vector<1x126xf32>
    %120 = arith.select %117, %119, %115 : vector<1x126xi1>, vector<1x126xf32>
    %c45_i32_20 = arith.constant 45 : i32
    %121 = vector.broadcast %c45_i32_20 : i32 to vector<1x126xi32>
    %122 = arith.cmpi sge, %10, %121 : vector<1x126xi32>
    %cst_21 = arith.constant 2.000000e+00 : f32
    %123 = vector.broadcast %cst_21 : f32 to vector<1x126xf32>
    %124 = arith.mulf %120, %123 : vector<1x126xf32>
    %125 = arith.select %122, %124, %120 : vector<1x126xi1>, vector<1x126xf32>
    %c51_i32_22 = arith.constant 51 : i32
    %126 = vector.broadcast %c51_i32_22 : i32 to vector<1x126xi32>
    %127 = arith.cmpi sge, %10, %126 : vector<1x126xi32>
    %cst_23 = arith.constant 2.000000e+00 : f32
    %128 = vector.broadcast %cst_23 : f32 to vector<1x126xf32>
    %129 = arith.mulf %125, %128 : vector<1x126xf32>
    %130 = arith.select %127, %129, %125 : vector<1x126xi1>, vector<1x126xf32>
    %c57_i32_24 = arith.constant 57 : i32
    %131 = vector.broadcast %c57_i32_24 : i32 to vector<1x126xi32>
    %132 = arith.cmpi sge, %10, %131 : vector<1x126xi32>
    %cst_25 = arith.constant 2.000000e+00 : f32
    %133 = vector.broadcast %cst_25 : f32 to vector<1x126xf32>
    %134 = arith.mulf %130, %133 : vector<1x126xf32>
    %135 = arith.select %132, %134, %130 : vector<1x126xi1>, vector<1x126xf32>
    %136 = vector.extract_strided_slice %0 {offsets = [0, 0], sizes = [64, 1], strides = [1, 1]} : vector<64x6xf32> to vector<64x1xf32>
    %137 = vector.shape_cast %136 : vector<64x1xf32> to vector<64x1xf32>
    %138 = vector.broadcast %137 : vector<64x1xf32> to vector<64x126xf32>
    %c1_i32_26 = arith.constant 1 : i32
    %139 = vector.broadcast %c1_i32_26 : i32 to vector<1x126xi32>
    %140 = arith.cmpi eq, %25, %139 : vector<1x126xi32>
    %141 = vector.extract_strided_slice %0 {offsets = [0, 1], sizes = [64, 1], strides = [1, 1]} : vector<64x6xf32> to vector<64x1xf32>
    %142 = vector.shape_cast %141 : vector<64x1xf32> to vector<64x1xf32>
    %143 = vector.broadcast %142 : vector<64x1xf32> to vector<64x126xf32>
    %144 = vector.shape_cast %140 : vector<1x126xi1> to vector<1x126xi1>
    %145 = vector.broadcast %144 : vector<1x126xi1> to vector<64x126xi1>
    %146 = arith.select %145, %143, %138 : vector<64x126xi1>, vector<64x126xf32>
    %c2_i32 = arith.constant 2 : i32
    %147 = vector.broadcast %c2_i32 : i32 to vector<1x126xi32>
    %148 = arith.cmpi eq, %25, %147 : vector<1x126xi32>
    %149 = vector.extract_strided_slice %0 {offsets = [0, 2], sizes = [64, 1], strides = [1, 1]} : vector<64x6xf32> to vector<64x1xf32>
    %150 = vector.shape_cast %149 : vector<64x1xf32> to vector<64x1xf32>
    %151 = vector.broadcast %150 : vector<64x1xf32> to vector<64x126xf32>
    %152 = vector.shape_cast %148 : vector<1x126xi1> to vector<1x126xi1>
    %153 = vector.broadcast %152 : vector<1x126xi1> to vector<64x126xi1>
    %154 = arith.select %153, %151, %146 : vector<64x126xi1>, vector<64x126xf32>
    %c3_i32_27 = arith.constant 3 : i32
    %155 = vector.broadcast %c3_i32_27 : i32 to vector<1x126xi32>
    %156 = arith.cmpi eq, %25, %155 : vector<1x126xi32>
    %157 = vector.extract_strided_slice %0 {offsets = [0, 3], sizes = [64, 1], strides = [1, 1]} : vector<64x6xf32> to vector<64x1xf32>
    %158 = vector.shape_cast %157 : vector<64x1xf32> to vector<64x1xf32>
    %159 = vector.broadcast %158 : vector<64x1xf32> to vector<64x126xf32>
    %160 = vector.shape_cast %156 : vector<1x126xi1> to vector<1x126xi1>
    %161 = vector.broadcast %160 : vector<1x126xi1> to vector<64x126xi1>
    %162 = arith.select %161, %159, %154 : vector<64x126xi1>, vector<64x126xf32>
    %c4_i32 = arith.constant 4 : i32
    %163 = vector.broadcast %c4_i32 : i32 to vector<1x126xi32>
    %164 = arith.cmpi eq, %25, %163 : vector<1x126xi32>
    %165 = vector.extract_strided_slice %0 {offsets = [0, 4], sizes = [64, 1], strides = [1, 1]} : vector<64x6xf32> to vector<64x1xf32>
    %166 = vector.shape_cast %165 : vector<64x1xf32> to vector<64x1xf32>
    %167 = vector.broadcast %166 : vector<64x1xf32> to vector<64x126xf32>
    %168 = vector.shape_cast %164 : vector<1x126xi1> to vector<1x126xi1>
    %169 = vector.broadcast %168 : vector<1x126xi1> to vector<64x126xi1>
    %170 = arith.select %169, %167, %162 : vector<64x126xi1>, vector<64x126xf32>
    %c5_i32 = arith.constant 5 : i32
    %171 = vector.broadcast %c5_i32 : i32 to vector<1x126xi32>
    %172 = arith.cmpi eq, %25, %171 : vector<1x126xi32>
    %173 = vector.extract_strided_slice %0 {offsets = [0, 5], sizes = [64, 1], strides = [1, 1]} : vector<64x6xf32> to vector<64x1xf32>
    %174 = vector.shape_cast %173 : vector<64x1xf32> to vector<64x1xf32>
    %175 = vector.broadcast %174 : vector<64x1xf32> to vector<64x126xf32>
    %176 = vector.shape_cast %172 : vector<1x126xi1> to vector<1x126xi1>
    %177 = vector.broadcast %176 : vector<1x126xi1> to vector<64x126xi1>
    %178 = arith.select %177, %175, %170 : vector<64x126xi1>, vector<64x126xf32>
    %179 = vector.broadcast %135 : vector<1x126xf32> to vector<64x126xf32>
    %180 = arith.mulf %178, %179 : vector<64x126xf32>
    %181 = math.sin %180 : vector<64x126xf32>
    %182 = math.cos %180 : vector<64x126xf32>
    %183 = vector.shape_cast %87 : vector<1x126xi1> to vector<1x126xi1>
    %184 = vector.broadcast %183 : vector<1x126xi1> to vector<64x126xi1>
    %185 = arith.select %184, %181, %182 : vector<64x126xi1>, vector<64x126xf32>
    %186 = vector.shape_cast %12 : vector<1x126xi1> to vector<1x126xi1>
    %187 = vector.broadcast %186 : vector<1x126xi1> to vector<64x126xi1>
    %188 = arith.select %187, %178, %185 : vector<64x126xi1>, vector<64x126xf32>
    %c0_28 = arith.constant 0 : index
    %c0_29 = arith.constant 0 : index
    %189 = vector.load %arg2[%c0_28, %c0_29] : memref<64x126xf32, #tpu.memory_space<vmem>>, vector<64x126xf32>
    tpu.vector_store %arg2[%c0_28, %c0_29], %188 {strides = array<i32>} : memref<64x126xf32, #tpu.memory_space<vmem>>, vector<64x126xf32>,
    return
  }
  func.func @transform_0(%arg0: i32) -> (i32, i32) {
    %c0_i32 = arith.constant 0 : i32
    %c0_i32_0 = arith.constant 0 : i32
    return %arg0, %c0_i32 : i32, i32
  }
  func.func @transform_1(%arg0: i32) -> (i32, i32) {
    %c0_i32 = arith.constant 0 : i32
    %c0_i32_0 = arith.constant 0 : i32
    return %arg0, %c0_i32 : i32, i32
  }
}

</mosaic_0001>

<llo_original>
// kernel: tpu_custom_call.1
$region0: #{tpu_custom_call.1}
  #allocation0 [shape = 'u32[]', space=smem, size = 0x4, offset = 0x4, fixed_abs, tag = 'smem constant byte address 0x4 - core index']
  #allocation1 [shape = 'u32[72,128]{1,0:T(1,128)}', space=vmem, size = 0x9000, scoped, tag = 'internal scratch']
  %s0 = inlined_call_operand.vmem [shape: f32[128,6], index: 0, kind: input, shape index: {}]
  %s1 = inlined_call_operand.hbm [shape: f32[128,126], index: 1, kind: output, shape index: {}]
  %s2 = sld [smem:[#allocation0]]
  $region37: #{tpu_custom_call.1} parent=0
    _
  %s4 = ssub.s32 1, %s2
  %s5 = scalar_select 0, %s4, %s2
  $region1: #{tpu_custom_call.1} parent=0
    #allocation2 [shape = 'u8[65536]{0}', space=vmem, size = 0x10000, scoped, tag = 'output window, operand 0']
    #allocation3 [shape = 's32[2]{0}', space=sflag, size = 0x8, scoped, tag = 'scoped memory for tpu_custom_call.1']
    %6 = vsyncpa [#allocation3], 0
    %s7 = scalar_lea.sflag [#allocation3], 1
    %8 = vsyncpa %s7, 0
    loop: start=0, step=1, limit=4
    $region2: #{tpu_custom_call.1} parent=1 // loop_pre_header
      _
    $region3: #{tpu_custom_call.1} parent=1 // loop_header
      %s10 = sphi 0, %s14
      %p11 = scmp.ge.s32.totalorder %s10, 4
      %s20 = sphi 0, %s22
      %s23 = sphi 0, %s20
      %s24 = sphi 0, %s23
      %s40 = sphi 0, %s24
      %s46 = sphi 0, %s48
      %s49 = sphi 0, %s46
      %s50 = sphi 0, %s49
      %s66 = sphi 0, %s50
    $region4: #{tpu_custom_call.1} parent=1 // loop_header_branch
      %13 = sbr.rel (%p11) target = $region8
    $region5: #{tpu_custom_call.1} parent=1 // loop_body
      %s15 = ssub.s32 %s10, 1
      %s16 = ssub.s32 %s10, 2
      %s17 = sadd.s32 %s10, 1
      %s18 = ssub.s32 %s10, %s17
      %p19 = scmp.eq.s32.totalorder %s18, 0
      %s21 = sadd.s32 %s20, 1
      %s22 = scalar_select %p19, %s20, %s21
      %p25 = pneg %p19
      %p26 = scmp.eq.s32.totalorder %s10, 1
      %p27 = por %p25, %p26
      %p28 = scmp.ne.s32.totalorder %s20, %s23
      %p29 = scmp.eq.s32.totalorder %s10, 0
      %p30 = por %p28, %p29
      %p31 = scmp.ne.s32.totalorder %s20, %s23
      %p32 = scmp.eq.s32.totalorder %s15, 1
      %p33 = por %p31, %p32
      %p34 = scmp.ne.s32.totalorder %s23, %s24
      %p35 = scmp.eq.s32.totalorder %s15, 0
      %p36 = por %p34, %p35
      %p37 = scmp.ne.s32.totalorder %s23, %s24
      %p38 = scmp.eq.s32.totalorder %s16, 1
      %p39 = por %p37, %p38
      %p41 = scmp.ne.s32.totalorder %s24, %s40
      %p42 = scmp.eq.s32.totalorder %s16, 0
      %p43 = por %p41, %p42
      %s44 = ssub.s32 %s10, %s17
      %p45 = scmp.eq.s32.totalorder %s44, 0
      %s47 = sadd.s32 %s46, 1
      %s48 = scalar_select %p45, %s46, %s47
      %p51 = pneg %p45
      %p52 = scmp.eq.s32.totalorder %s10, 1
      %p53 = por %p51, %p52
      %p54 = scmp.ne.s32.totalorder %s46, %s49
      %p55 = scmp.eq.s32.totalorder %s10, 0
      %p56 = por %p54, %p55
      %p57 = scmp.ne.s32.totalorder %s46, %s49
      %p58 = scmp.eq.s32.totalorder %s15, 1
      %p59 = por %p57, %p58
      %p60 = scmp.ne.s32.totalorder %s49, %s50
      %p61 = scmp.eq.s32.totalorder %s15, 0
      %p62 = por %p60, %p61
      %p63 = scmp.ne.s32.totalorder %s49, %s50
      %p64 = scmp.eq.s32.totalorder %s16, 1
      %p65 = por %p63, %p64
      %p67 = scmp.ne.s32.totalorder %s50, %s66
      %p68 = scmp.eq.s32.totalorder %s16, 0
      %p69 = por %p67, %p68
      %p70 = scmp.le.s32.totalorder 1, %s10
      %p71 = scmp.lt.s32.totalorder %s10, 3
      %p72 = pnand %p70, %p71
      %p73 = pneg %p72
      // Predicated region
      $region9: #{tpu_custom_call.1} parent=5 // pred_check
        _
      $region10: #{tpu_custom_call.1} parent=5 // pred_check_branch
        %75 = sbr.rel (%p72) target = $region12
      $region11: #{tpu_custom_call.1} parent=5 // pred_region
        %s76 = ssub.s32 %s10, 1
      $region12: #{tpu_custom_call.1} parent=5 // pred_fallthru
        _
      %p77 = scmp.lt.s32.totalorder %s10, 2
      // Predicated region
      $region13: #{tpu_custom_call.1} parent=5 // pred_check
        %p78 = pneg %p77
      $region14: #{tpu_custom_call.1} parent=5 // pred_check_branch
        %80 = sbr.rel (%p78) target = $region16
      $region15: #{tpu_custom_call.1} parent=5 // pred_region
        // Predicated region
        $region17: #{tpu_custom_call.1} parent=15 // pred_check
          %p81 = pneg %p30
        $region18: #{tpu_custom_call.1} parent=15 // pred_check_branch
          %83 = sbr.rel (%p81) target = $region20
        $region19: #{tpu_custom_call.1} parent=15 // pred_region
          %s84 = smul.u32 8, %s10
          %p85 = scmp.lt.s32.totalorder %s84, 15
          %s86 = scalar_select %p85, %s84, 15
          %s87 = smul.addr %s86, 8
          %s88 = scalar_lea.vmem %s0, %s87
          %s89 = smul.u32 8, %s10
        $region20: #{tpu_custom_call.1} parent=15 // pred_fallthru
          _
      $region16: #{tpu_custom_call.1} parent=5 // pred_fallthru
        _
      %p90 = scmp.le.s32.totalorder 1, %s10
      %p91 = scmp.lt.s32.totalorder %s10, 3
      %p92 = pnand %p90, %p91
      %p93 = pneg %p92
      // Predicated region
      $region21: #{tpu_custom_call.1} parent=5 // pred_check
        _
      $region22: #{tpu_custom_call.1} parent=5 // pred_check_branch
        %95 = sbr.rel (%p92) target = $region24
      $region23: #{tpu_custom_call.1} parent=5 // pred_region
        %s96 = ssub.s32 %s10, 1
        %s97 = smul.u32 8, %s15
        %p98 = scmp.lt.s32.totalorder %s97, 15
        %s99 = scalar_select %p98, %s97, 15
        %s100 = smul.addr %s99, 8
        %s101 = scalar_lea.vmem %s0, %s100
        %p102 = pneg %p36
        %p103 = pneg %p33
        %p104 = pneg %p62
        %p105 = pneg %p59
        %s106 = sand.u32 %s49, 1
        %s107 = scalar_lea.sflag [#allocation3], %s106
        %s108 = sand.u32 %s49, 1
        %s109 = smul.addr %s108, 64
        %s110 = scalar_lea.vmem [#allocation2], %s109
        %s111 = smul.u32 8, %s15
        %p112 = scmp.lt.s32.totalorder %s111, 15
        %s113 = scalar_select %p112, %s111, 15
        %s114 = smul.addr %s113, 8
        %s115 = scalar_lea.vmem %s0, %s114
        %s116 = smul.u32 8, %s15
        %s117 = smul.u32 8, %s15
        %v118 = vld [vmem:[%s115] sm:$0xff]
        %v119 = vld [vmem:[%s115 + $0x8] sm:$0xff]
        %v120 = vld [vmem:[%s115 + $0x10] sm:$0xff]
        %v121 = vld [vmem:[%s115 + $0x18] sm:$0xff]
        %v122 = vld [vmem:[%s115 + $0x20] sm:$0xff]
        %v123 = vld [vmem:[%s115 + $0x28] sm:$0xff]
        %v124 = vld [vmem:[%s115 + $0x30] sm:$0xff]
        %v125 = vld [vmem:[%s115 + $0x38] sm:$0xff]
        %v126 = vlaneseq
        %v127 = vand.u32 %v126, 127
        %vm128 = vcmp.ge.s32.totalorder %v127, 63
        %v129 = vsel %vm128, 1, 0
        %v130 = vsub.s32 %v127, 63
        %v131 = vsel %vm128, %v130, %v127
        %vm132 = vcmp.lt.s32.totalorder %v131, 3
        %v133 = vcvt.s32.f32 %v131
        %v134 = vadd.f32 %v133, 0.5
        %v135 = vmul.f32 %v134, 0.33333334
        %v136 = vfloor.f32 %v135
        %v137 = vmul.f32 %v136, 3.0
        %v138 = vcvt.f32.s32.to.zero.pseudo %v137
        %v139 = vsub.s32 %v131, %v138
        %v140 = vmul.u32 %v129, 3
        %v141 = vadd.s32 %v139, %v140
        %vm142 = vcmp.lt.s32.totalorder %v131, 0
        %vm143 = vcmp.ge.s32.totalorder %v131, 3
        %vm144 = vcmp.lt.s32.totalorder %v131, 6
        %vm145 = vmand %vm143, %vm144
        %vm146 = vmor %vm142, %vm145
        %vm147 = vcmp.ge.s32.totalorder %v131, 9
        %vm148 = vcmp.lt.s32.totalorder %v131, 12
        %vm149 = vmand %vm147, %vm148
        %vm150 = vmor %vm146, %vm149
        %vm151 = vcmp.ge.s32.totalorder %v131, 15
        %vm152 = vcmp.lt.s32.totalorder %v131, 18
        %vm153 = vmand %vm151, %vm152
        %vm154 = vmor %vm150, %vm153
        %vm155 = vcmp.ge.s32.totalorder %v131, 21
        %vm156 = vcmp.lt.s32.totalorder %v131, 24
        %vm157 = vmand %vm155, %vm156
        %vm158 = vmor %vm154, %vm157
        %vm159 = vcmp.ge.s32.totalorder %v131, 27
        %vm160 = vcmp.lt.s32.totalorder %v131, 30
        %vm161 = vmand %vm159, %vm160
        %vm162 = vmor %vm158, %vm161
        %vm163 = vcmp.ge.s32.totalorder %v131, 33
        %vm164 = vcmp.lt.s32.totalorder %v131, 36
        %vm165 = vmand %vm163, %vm164
        %vm166 = vmor %vm162, %vm165
        %vm167 = vcmp.ge.s32.totalorder %v131, 39
        %vm168 = vcmp.lt.s32.totalorder %v131, 42
        %vm169 = vmand %vm167, %vm168
        %vm170 = vmor %vm166, %vm169
        %vm171 = vcmp.ge.s32.totalorder %v131, 45
        %vm172 = vcmp.lt.s32.totalorder %v131, 48
        %vm173 = vmand %vm171, %vm172
        %vm174 = vmor %vm170, %vm173
        %vm175 = vcmp.ge.s32.totalorder %v131, 51
        %vm176 = vcmp.lt.s32.totalorder %v131, 54
        %vm177 = vmand %vm175, %vm176
        %vm178 = vmor %vm174, %vm177
        %vm179 = vcmp.ge.s32.totalorder %v131, 57
        %vm180 = vcmp.lt.s32.totalorder %v131, 60
        %vm181 = vmand %vm179, %vm180
        %vm182 = vmor %vm178, %vm181
        %v183 = vsel %vm132, 1.0, 3.1415927
        %v184 = vmul.f32 %v183, 2.0
        %v185 = vsel %vm147, %v184, %v183
        %v186 = vmul.f32 %v185, 2.0
        %v187 = vsel %vm151, %v186, %v185
        %v188 = vmul.f32 %v187, 2.0
        %v189 = vsel %vm155, %v188, %v187
        %v190 = vmul.f32 %v189, 2.0
        %v191 = vsel %vm159, %v190, %v189
        %v192 = vmul.f32 %v191, 2.0
        %v193 = vsel %vm163, %v192, %v191
        %v194 = vmul.f32 %v193, 2.0
        %v195 = vsel %vm167, %v194, %v193
        %v196 = vmul.f32 %v195, 2.0
        %v197 = vsel %vm171, %v196, %v195
        %v198 = vmul.f32 %v197, 2.0
        %v199 = vsel %vm175, %v198, %v197
        %v200 = vmul.f32 %v199, 2.0
        %v201 = vsel %vm179, %v200, %v199
        %203 = vset.pattern.permute.xlu0 0
        %204 = vperm.xlu0 %203, %v118
        %v205 = vpop.permute.xlu0 %204
        %208 = vset.pattern.permute.xlu0 0
        %209 = vperm.xlu0 %208, %v119
        %v210 = vpop.permute.xlu0 %209
        %213 = vset.pattern.permute.xlu0 0
        %214 = vperm.xlu0 %213, %v120
        %v215 = vpop.permute.xlu0 %214
        %218 = vset.pattern.permute.xlu0 0
        %219 = vperm.xlu0 %218, %v121
        %v220 = vpop.permute.xlu0 %219
        %223 = vset.pattern.permute.xlu0 0
        %224 = vperm.xlu0 %223, %v122
        %v225 = vpop.permute.xlu0 %224
        %228 = vset.pattern.permute.xlu0 0
        %229 = vperm.xlu0 %228, %v123
        %v230 = vpop.permute.xlu0 %229
        %233 = vset.pattern.permute.xlu0 0
        %234 = vperm.xlu0 %233, %v124
        %v235 = vpop.permute.xlu0 %234
        %238 = vset.pattern.permute.xlu0 0
        %239 = vperm.xlu0 %238, %v125
        %v240 = vpop.permute.xlu0 %239
        %vm242 = vcmp.eq.s32.totalorder %v141, 1
        %243 = vset.pattern.permute.xlu0 1
        %244 = vperm.xlu0 %243, %v118
        %v245 = vpop.permute.xlu0 %244
        %247 = vset.pattern.permute.xlu0 1
        %248 = vperm.xlu0 %247, %v119
        %v249 = vpop.permute.xlu0 %248
        %251 = vset.pattern.permute.xlu0 1
        %252 = vperm.xlu0 %251, %v120
        %v253 = vpop.permute.xlu0 %252
        %255 = vset.pattern.permute.xlu0 1
        %256 = vperm.xlu0 %255, %v121
        %v257 = vpop.permute.xlu0 %256
        %259 = vset.pattern.permute.xlu0 1
        %260 = vperm.xlu0 %259, %v122
        %v261 = vpop.permute.xlu0 %260
        %263 = vset.pattern.permute.xlu0 1
        %264 = vperm.xlu0 %263, %v123
        %v265 = vpop.permute.xlu0 %264
        %267 = vset.pattern.permute.xlu0 1
        %268 = vperm.xlu0 %267, %v124
        %v269 = vpop.permute.xlu0 %268
        %271 = vset.pattern.permute.xlu0 1
        %272 = vperm.xlu0 %271, %v125
        %v273 = vpop.permute.xlu0 %272
        %v275 = vsel %vm242, 1, 0
        %vm276 = vcmp.eq.s32.totalorder %v275, 1
        %v277 = vsel %vm276, %v245, %v205
        %v278 = vsel %vm276, %v249, %v210
        %v279 = vsel %vm276, %v253, %v215
        %v280 = vsel %vm276, %v257, %v220
        %v281 = vsel %vm276, %v261, %v225
        %v282 = vsel %vm276, %v265, %v230
        %v283 = vsel %vm276, %v269, %v235
        %v284 = vsel %vm276, %v273, %v240
        %vm285 = vcmp.eq.s32.totalorder %v141, 2
        %286 = vset.pattern.permute.xlu0 2
        %287 = vperm.xlu0 %286, %v118
        %v288 = vpop.permute.xlu0 %287
        %290 = vset.pattern.permute.xlu0 2
        %291 = vperm.xlu0 %290, %v119
        %v292 = vpop.permute.xlu0 %291
        %294 = vset.pattern.permute.xlu0 2
        %295 = vperm.xlu0 %294, %v120
        %v296 = vpop.permute.xlu0 %295
        %298 = vset.pattern.permute.xlu0 2
        %299 = vperm.xlu0 %298, %v121
        %v300 = vpop.permute.xlu0 %299
        %302 = vset.pattern.permute.xlu0 2
        %303 = vperm.xlu0 %302, %v122
        %v304 = vpop.permute.xlu0 %303
        %306 = vset.pattern.permute.xlu0 2
        %307 = vperm.xlu0 %306, %v123
        %v308 = vpop.permute.xlu0 %307
        %310 = vset.pattern.permute.xlu0 2
        %311 = vperm.xlu0 %310, %v124
        %v312 = vpop.permute.xlu0 %311
        %314 = vset.pattern.permute.xlu0 2
        %315 = vperm.xlu0 %314, %v125
        %v316 = vpop.permute.xlu0 %315
        %v318 = vsel %vm285, 1, 0
        %vm319 = vcmp.eq.s32.totalorder %v318, 1
        %v320 = vsel %vm319, %v288, %v277
        %v321 = vsel %vm319, %v292, %v278
        %v322 = vsel %vm319, %v296, %v279
        %v323 = vsel %vm319, %v300, %v280
        %v324 = vsel %vm319, %v304, %v281
        %v325 = vsel %vm319, %v308, %v282
        %v326 = vsel %vm319, %v312, %v283
        %v327 = vsel %vm319, %v316, %v284
        %vm328 = vcmp.eq.s32.totalorder %v141, 3
        %329 = vset.pattern.permute.xlu0 3
        %330 = vperm.xlu0 %329, %v118
        %v331 = vpop.permute.xlu0 %330
        %333 = vset.pattern.permute.xlu0 3
        %334 = vperm.xlu0 %333, %v119
        %v335 = vpop.permute.xlu0 %334
        %337 = vset.pattern.permute.xlu0 3
        %338 = vperm.xlu0 %337, %v120
        %v339 = vpop.permute.xlu0 %338
        %341 = vset.pattern.permute.xlu0 3
        %342 = vperm.xlu0 %341, %v121
        %v343 = vpop.permute.xlu0 %342
        %345 = vset.pattern.permute.xlu0 3
        %346 = vperm.xlu0 %345, %v122
        %v347 = vpop.permute.xlu0 %346
        %349 = vset.pattern.permute.xlu0 3
        %350 = vperm.xlu0 %349, %v123
        %v351 = vpop.permute.xlu0 %350
        %353 = vset.pattern.permute.xlu0 3
        %354 = vperm.xlu0 %353, %v124
        %v355 = vpop.permute.xlu0 %354
        %357 = vset.pattern.permute.xlu0 3
        %358 = vperm.xlu0 %357, %v125
        %v359 = vpop.permute.xlu0 %358
        %v361 = vsel %vm328, 1, 0
        %vm362 = vcmp.eq.s32.totalorder %v361, 1
        %v363 = vsel %vm362, %v331, %v320
        %v364 = vsel %vm362, %v335, %v321
        %v365 = vsel %vm362, %v339, %v322
        %v366 = vsel %vm362, %v343, %v323
        %v367 = vsel %vm362, %v347, %v324
        %v368 = vsel %vm362, %v351, %v325
        %v369 = vsel %vm362, %v355, %v326
        %v370 = vsel %vm362, %v359, %v327
        %vm371 = vcmp.eq.s32.totalorder %v141, 4
        %372 = vset.pattern.permute.xlu0 4
        %373 = vperm.xlu0 %372, %v118
        %v374 = vpop.permute.xlu0 %373
        %376 = vset.pattern.permute.xlu0 4
        %377 = vperm.xlu0 %376, %v119
        %v378 = vpop.permute.xlu0 %377
        %380 = vset.pattern.permute.xlu0 4
        %381 = vperm.xlu0 %380, %v120
        %v382 = vpop.permute.xlu0 %381
        %384 = vset.pattern.permute.xlu0 4
        %385 = vperm.xlu0 %384, %v121
        %v386 = vpop.permute.xlu0 %385
        %388 = vset.pattern.permute.xlu0 4
        %389 = vperm.xlu0 %388, %v122
        %v390 = vpop.permute.xlu0 %389
        %392 = vset.pattern.permute.xlu0 4
        %393 = vperm.xlu0 %392, %v123
        %v394 = vpop.permute.xlu0 %393
        %396 = vset.pattern.permute.xlu0 4
        %397 = vperm.xlu0 %396, %v124
        %v398 = vpop.permute.xlu0 %397
        %400 = vset.pattern.permute.xlu0 4
        %401 = vperm.xlu0 %400, %v125
        %v402 = vpop.permute.xlu0 %401
        %v404 = vsel %vm371, 1, 0
        %vm405 = vcmp.eq.s32.totalorder %v404, 1
        %v406 = vsel %vm405, %v374, %v363
        %v407 = vsel %vm405, %v378, %v364
        %v408 = vsel %vm405, %v382, %v365
        %v409 = vsel %vm405, %v386, %v366
        %v410 = vsel %vm405, %v390, %v367
        %v411 = vsel %vm405, %v394, %v368
        %v412 = vsel %vm405, %v398, %v369
        %v413 = vsel %vm405, %v402, %v370
        %vm414 = vcmp.eq.s32.totalorder %v141, 5
        %415 = vset.pattern.permute.xlu0 5
        %416 = vperm.xlu0 %415, %v118
        %v417 = vpop.permute.xlu0 %416
        %419 = vset.pattern.permute.xlu0 5
        %420 = vperm.xlu0 %419, %v119
        %v421 = vpop.permute.xlu0 %420
        %423 = vset.pattern.permute.xlu0 5
        %424 = vperm.xlu0 %423, %v120
        %v425 = vpop.permute.xlu0 %424
        %427 = vset.pattern.permute.xlu0 5
        %428 = vperm.xlu0 %427, %v121
        %v429 = vpop.permute.xlu0 %428
        %431 = vset.pattern.permute.xlu0 5
        %432 = vperm.xlu0 %431, %v122
        %v433 = vpop.permute.xlu0 %432
        %435 = vset.pattern.permute.xlu0 5
        %436 = vperm.xlu0 %435, %v123
        %v437 = vpop.permute.xlu0 %436
        %439 = vset.pattern.permute.xlu0 5
        %440 = vperm.xlu0 %439, %v124
        %v441 = vpop.permute.xlu0 %440
        %443 = vset.pattern.permute.xlu0 5
        %444 = vperm.xlu0 %443, %v125
        %v445 = vpop.permute.xlu0 %444
        %v447 = vsel %vm414, 1, 0
        %vm448 = vcmp.eq.s32.totalorder %v447, 1
        %v449 = vsel %vm448, %v417, %v406
        %v450 = vsel %vm448, %v421, %v407
        %v451 = vsel %vm448, %v425, %v408
        %v452 = vsel %vm448, %v429, %v409
        %v453 = vsel %vm448, %v433, %v410
        %v454 = vsel %vm448, %v437, %v411
        %v455 = vsel %vm448, %v441, %v412
        %v456 = vsel %vm448, %v445, %v413
        %v457 = vmul.f32 %v449, %v201
        %v458 = vmul.f32 %v450, %v201
        %v459 = vmul.f32 %v451, %v201
        %v460 = vmul.f32 %v452, %v201
        %v461 = vmul.f32 %v453, %v201
        %v462 = vmul.f32 %v454, %v201
        %v463 = vmul.f32 %v455, %v201
        %v464 = vmul.f32 %v456, %v201
        %v465 = vand.u32 2147483647, %v457
        %vm466 = vcmp.le.f32.partialorder %v465, 0.7853982
        %vm467 = vcmp.lt.s32.totalorder %v457, 0
        %v468 = vand.u32 %v457, 2139095040
        %v469 = vshrl.u32 %v468, 23
        %v470 = vsub.s32 %v469, 127
        %v471 = vand.u32 2147483647, %v457
        %v472 = vand.u32 %v471, 8388607
        %v473 = vor.u32 %v472, 8388608
        %v474 = vsub.s32 0, %v473
        %v475 = vadd.s32 %v470, 1
        %vm476 = vcmp.gt.s32.totalorder %v475, 0
        %v477 = vsel %vm476, %v475, 0
        %v478 = vshrl.u32 %v477, 5
        %v479 = vand.u32 %v477, 31
        %v480 = vsub.s32 32, %v479
        %v481 = vshrl.u32 683565275, %v480
        %v482 = vshll.u32 683565275, %v479
        %v483 = vshrl.u32 2475754826, %v480
        %v484 = vor.u32 %v482, %v483
        %v485 = vshll.u32 2475754826, %v479
        %v486 = vshrl.u32 2131351028, %v480
        %v487 = vor.u32 %v485, %v486
        %v488 = vshll.u32 2131351028, %v479
        %v489 = vshrl.u32 2102212464, %v480
        %v490 = vor.u32 %v488, %v489
        %v491 = vshll.u32 2102212464, %v479
        %v492 = vshrl.u32 920167782, %v480
        %v493 = vor.u32 %v491, %v492
        %v494 = vshll.u32 920167782, %v479
        %v495 = vshrl.u32 1326507024, %v480
        %v496 = vor.u32 %v494, %v495
        %vm497 = vcmp.lt.s32.totalorder %v478, 1
        %vm498 = vcmp.lt.s32.totalorder %v478, 2
        %vm499 = vcmp.lt.s32.totalorder %v478, 3
        %vm500 = vcmp.lt.s32.totalorder %v478, 4
        %v501 = vsel %vm497, %v481, %v484
        %v502 = vsel %vm500, %v490, 2102212464
        %v503 = vsel %vm499, %v487, %v502
        %v504 = vsel %vm498, %v501, %v503
        %v505 = vsel %vm497, %v484, %v487
        %v506 = vsel %vm500, %v493, 920167782
        %v507 = vsel %vm499, %v490, %v506
        %v508 = vsel %vm498, %v505, %v507
        %v509 = vsel %vm497, %v487, %v490
        %v510 = vsel %vm500, %v496, 1326507024
        %v511 = vsel %vm499, %v493, %v510
        %v512 = vsel %vm498, %v509, %v511
        %v513 = vshll.u32 %v473, 8
        %v514 = vand.u32 %v513, 65535
        %v515 = vshrl.u32 %v513, 16
        %v516 = vand.u32 %v512, 65535
        %v517 = vshrl.u32 %v512, 16
        %v518 = vmul.u32 %v514, %v516
        %v519 = vmul.u32 %v514, %v517
        %v520 = vmul.u32 %v515, %v516
        %v521 = vmul.u32 %v515, %v517
        %v522 = vshll.u32 %v519, 16
        %v523 = vshrl.u32 %v519, 16
        %v524 = vshll.u32 %v520, 16
        %v525 = vshrl.u32 %v520, 16
        %vm526 = vc.u32 %v518, %v522
        %v527 = vsel %vm526, 1, 0
        %v528 = vadd.s32 %v518, %v522
        %v529 = vadd.s32 %v521, %v527
        %vm530 = vc.u32 %v528, %v524
        %v531 = vsel %vm530, 1, 0
        %v532 = vadd.s32 %v528, %v524
        %v533 = vadd.s32 %v529, %v531
        %v534 = vadd.s32 %v533, %v523
        %v535 = vadd.s32 %v534, %v525
        %v536 = vand.u32 %v513, 65535
        %v537 = vshrl.u32 %v513, 16
        %v538 = vand.u32 %v508, 65535
        %v539 = vshrl.u32 %v508, 16
        %v540 = vmul.u32 %v536, %v538
        %v541 = vmul.u32 %v536, %v539
        %v542 = vmul.u32 %v537, %v538
        %v543 = vmul.u32 %v537, %v539
        %v544 = vshll.u32 %v541, 16
        %v545 = vshrl.u32 %v541, 16
        %v546 = vshll.u32 %v542, 16
        %v547 = vshrl.u32 %v542, 16
        %vm548 = vc.u32 %v540, %v544
        %v549 = vsel %vm548, 1, 0
        %v550 = vadd.s32 %v540, %v544
        %v551 = vadd.s32 %v543, %v549
        %vm552 = vc.u32 %v550, %v546
        %v553 = vsel %vm552, 1, 0
        %v554 = vadd.s32 %v550, %v546
        %v555 = vadd.s32 %v551, %v553
        %v556 = vadd.s32 %v555, %v545
        %v557 = vadd.s32 %v556, %v547
        %v558 = vmul.u32 %v513, %v504
        %v559 = vadd.s32 %v535, %v554
        %vm560 = vc.u32 %v535, %v554
        %v561 = vadd.s32 %v557, 1
        %v562 = vsel %vm560, %v561, %v557
        %v563 = vadd.s32 %v558, %v562
        %v564 = vadd.s32 %v563, 536870912
        %v565 = vshrl.u32 %v564, 30
        %v566 = vshll.u32 %v565, 30
        %v567 = vsub.s32 %v563, %v566
        %vm568 = vcmp.lt.s32.totalorder %v567, 0
        %v569 = vsub.s32 0, %v567
        %v570 = vsel %vm568, %v569, %v567
        %v571 = vclz %v570
        %v572 = vsub.s32 %v571, 2
        %vm573 = vcmp.gt.s32.totalorder 0, %v572
        %v574 = vsel %vm573, 0, %v572
        %v575 = vsub.s32 32, %v574
        %v576 = vshll.u32 %v567, %v574
        %v577 = vshrl.u32 %v559, %v575
        %v578 = vor.u32 %v576, %v577
        %v579 = vsub.s32 4294967266, %v574
        %v580 = vadd.s32 %v579, 127
        %v581 = vshll.u32 %v580, 23
        %v582 = vor.u32 4788187, %v581
        %v583 = vand.u32 2147483647, %v582
        %v585 = vcvt.s32.f32 %v578
        %v586 = vmul.f32 %v585, %v583
        %v587 = vxor.u32 %v586, 2147483648
        %v588 = vsel %vm467, %v587, %v586
        %v589 = vsub.s32 4, %v565
        %v590 = vsel %vm467, %v589, %v565
        %v591 = vsel %vm466, %v457, %v588
        %v592 = vsel %vm466, 0, %v590
        %v593 = vmul.f32 %v591, %v591
        %v594 = vmul.f32 %v593, -0.001358992
        %v595 = vadd.f32 %v594, 0.041655596
        %v596 = vmul.f32 %v593, %v595
        %v597 = vadd.f32 %v596, -0.4999988
        %v598 = vmul.f32 %v593, %v597
        %v599 = vadd.f32 1.0, %v598
        %v600 = vmul.f32 %v591, %v591
        %v601 = vmul.f32 %v600, -0.00019511016
        %v602 = vadd.f32 %v601, 0.008332121
        %v603 = vmul.f32 %v600, %v602
        %v604 = vadd.f32 %v603, -0.16666654
        %v605 = vmul.f32 %v600, %v604
        %v606 = vadd.f32 %v605, 1.0
        %v607 = vmul.f32 %v606, %v591
        %vm608 = vweird.f32 %v457
        %v609 = vadd.s32 %v592, 3
        %v610 = vand.u32 %v609, 3
        %vm611 = vcmp.lt.s32.totalorder %v610, 2
        %vm612 = vcmp.eq.s32.totalorder %v610, 0
        %v613 = vxor.u32 %v607, 2147483648
        %v614 = vsel %vm612, %v599, %v613
        %vm615 = vcmp.eq.s32.totalorder %v610, 2
        %v616 = vxor.u32 %v599, 2147483648
        %v617 = vsel %vm615, %v616, %v607
        %v618 = vsel %vm611, %v614, %v617
        %v619 = vsel %vm608, nan, %v618
        %v620 = vand.u32 2147483647, %v458
        %vm621 = vcmp.le.f32.partialorder %v620, 0.7853982
        %vm622 = vcmp.lt.s32.totalorder %v458, 0
        %v623 = vand.u32 %v458, 2139095040
        %v624 = vshrl.u32 %v623, 23
        %v625 = vsub.s32 %v624, 127
        %v626 = vand.u32 2147483647, %v458
        %v627 = vand.u32 %v626, 8388607
        %v628 = vor.u32 %v627, 8388608
        %v629 = vsub.s32 0, %v628
        %v630 = vadd.s32 %v625, 1
        %vm631 = vcmp.gt.s32.totalorder %v630, 0
        %v632 = vsel %vm631, %v630, 0
        %v633 = vshrl.u32 %v632, 5
        %v634 = vand.u32 %v632, 31
        %v635 = vsub.s32 32, %v634
        %v636 = vshrl.u32 683565275, %v635
        %v637 = vshll.u32 683565275, %v634
        %v638 = vshrl.u32 2475754826, %v635
        %v639 = vor.u32 %v637, %v638
        %v640 = vshll.u32 2475754826, %v634
        %v641 = vshrl.u32 2131351028, %v635
        %v642 = vor.u32 %v640, %v641
        %v643 = vshll.u32 2131351028, %v634
        %v644 = vshrl.u32 2102212464, %v635
        %v645 = vor.u32 %v643, %v644
        %v646 = vshll.u32 2102212464, %v634
        %v647 = vshrl.u32 920167782, %v635
        %v648 = vor.u32 %v646, %v647
        %v649 = vshll.u32 920167782, %v634
        %v650 = vshrl.u32 1326507024, %v635
        %v651 = vor.u32 %v649, %v650
        %vm652 = vcmp.lt.s32.totalorder %v633, 1
        %vm653 = vcmp.lt.s32.totalorder %v633, 2
        %vm654 = vcmp.lt.s32.totalorder %v633, 3
        %vm655 = vcmp.lt.s32.totalorder %v633, 4
        %v656 = vsel %vm652, %v636, %v639
        %v657 = vsel %vm655, %v645, 2102212464
        %v658 = vsel %vm654, %v642, %v657
        %v659 = vsel %vm653, %v656, %v658
        %v660 = vsel %vm652, %v639, %v642
        %v661 = vsel %vm655, %v648, 920167782
        %v662 = vsel %vm654, %v645, %v661
        %v663 = vsel %vm653, %v660, %v662
        %v664 = vsel %vm652, %v642, %v645
        %v665 = vsel %vm655, %v651, 1326507024
        %v666 = vsel %vm654, %v648, %v665
        %v667 = vsel %vm653, %v664, %v666
        %v668 = vshll.u32 %v628, 8
        %v669 = vand.u32 %v668, 65535
        %v670 = vshrl.u32 %v668, 16
        %v671 = vand.u32 %v667, 65535
        %v672 = vshrl.u32 %v667, 16
        %v673 = vmul.u32 %v669, %v671
        %v674 = vmul.u32 %v669, %v672
        %v675 = vmul.u32 %v670, %v671
        %v676 = vmul.u32 %v670, %v672
        %v677 = vshll.u32 %v674, 16
        %v678 = vshrl.u32 %v674, 16
        %v679 = vshll.u32 %v675, 16
        %v680 = vshrl.u32 %v675, 16
        %vm681 = vc.u32 %v673, %v677
        %v682 = vsel %vm681, 1, 0
        %v683 = vadd.s32 %v673, %v677
        %v684 = vadd.s32 %v676, %v682
        %vm685 = vc.u32 %v683, %v679
        %v686 = vsel %vm685, 1, 0
        %v687 = vadd.s32 %v683, %v679
        %v688 = vadd.s32 %v684, %v686
        %v689 = vadd.s32 %v688, %v678
        %v690 = vadd.s32 %v689, %v680
        %v691 = vand.u32 %v668, 65535
        %v692 = vshrl.u32 %v668, 16
        %v693 = vand.u32 %v663, 65535
        %v694 = vshrl.u32 %v663, 16
        %v695 = vmul.u32 %v691, %v693
        %v696 = vmul.u32 %v691, %v694
        %v697 = vmul.u32 %v692, %v693
        %v698 = vmul.u32 %v692, %v694
        %v699 = vshll.u32 %v696, 16
        %v700 = vshrl.u32 %v696, 16
        %v701 = vshll.u32 %v697, 16
        %v702 = vshrl.u32 %v697, 16
        %vm703 = vc.u32 %v695, %v699
        %v704 = vsel %vm703, 1, 0
        %v705 = vadd.s32 %v695, %v699
        %v706 = vadd.s32 %v698, %v704
        %vm707 = vc.u32 %v705, %v701
        %v708 = vsel %vm707, 1, 0
        %v709 = vadd.s32 %v705, %v701
        %v710 = vadd.s32 %v706, %v708
        %v711 = vadd.s32 %v710, %v700
        %v712 = vadd.s32 %v711, %v702
        %v713 = vmul.u32 %v668, %v659
        %v714 = vadd.s32 %v690, %v709
        %vm715 = vc.u32 %v690, %v709
        %v716 = vadd.s32 %v712, 1
        %v717 = vsel %vm715, %v716, %v712
        %v718 = vadd.s32 %v713, %v717
        %v719 = vadd.s32 %v718, 536870912
        %v720 = vshrl.u32 %v719, 30
        %v721 = vshll.u32 %v720, 30
        %v722 = vsub.s32 %v718, %v721
        %vm723 = vcmp.lt.s32.totalorder %v722, 0
        %v724 = vsub.s32 0, %v722
        %v725 = vsel %vm723, %v724, %v722
        %v726 = vclz %v725
        %v727 = vsub.s32 %v726, 2
        %vm728 = vcmp.gt.s32.totalorder 0, %v727
        %v729 = vsel %vm728, 0, %v727
        %v730 = vsub.s32 32, %v729
        %v731 = vshll.u32 %v722, %v729
        %v732 = vshrl.u32 %v714, %v730
        %v733 = vor.u32 %v731, %v732
        %v734 = vsub.s32 4294967266, %v729
        %v735 = vadd.s32 %v734, 127
        %v736 = vshll.u32 %v735, 23
        %v737 = vor.u32 4788187, %v736
        %v738 = vand.u32 2147483647, %v737
        %v740 = vcvt.s32.f32 %v733
        %v741 = vmul.f32 %v740, %v738
        %v742 = vxor.u32 %v741, 2147483648
        %v743 = vsel %vm622, %v742, %v741
        %v744 = vsub.s32 4, %v720
        %v745 = vsel %vm622, %v744, %v720
        %v746 = vsel %vm621, %v458, %v743
        %v747 = vsel %vm621, 0, %v745
        %v748 = vmul.f32 %v746, %v746
        %v749 = vmul.f32 %v748, -0.001358992
        %v750 = vadd.f32 %v749, 0.041655596
        %v751 = vmul.f32 %v748, %v750
        %v752 = vadd.f32 %v751, -0.4999988
        %v753 = vmul.f32 %v748, %v752
        %v754 = vadd.f32 1.0, %v753
        %v755 = vmul.f32 %v746, %v746
        %v756 = vmul.f32 %v755, -0.00019511016
        %v757 = vadd.f32 %v756, 0.008332121
        %v758 = vmul.f32 %v755, %v757
        %v759 = vadd.f32 %v758, -0.16666654
        %v760 = vmul.f32 %v755, %v759
        %v761 = vadd.f32 %v760, 1.0
        %v762 = vmul.f32 %v761, %v746
        %vm763 = vweird.f32 %v458
        %v764 = vadd.s32 %v747, 3
        %v765 = vand.u32 %v764, 3
        %vm766 = vcmp.lt.s32.totalorder %v765, 2
        %vm767 = vcmp.eq.s32.totalorder %v765, 0
        %v768 = vxor.u32 %v762, 2147483648
        %v769 = vsel %vm767, %v754, %v768
        %vm770 = vcmp.eq.s32.totalorder %v765, 2
        %v771 = vxor.u32 %v754, 2147483648
        %v772 = vsel %vm770, %v771, %v762
        %v773 = vsel %vm766, %v769, %v772
        %v774 = vsel %vm763, nan, %v773
        %v775 = vand.u32 2147483647, %v459
        %vm776 = vcmp.le.f32.partialorder %v775, 0.7853982
        %vm777 = vcmp.lt.s32.totalorder %v459, 0
        %v778 = vand.u32 %v459, 2139095040
        %v779 = vshrl.u32 %v778, 23
        %v780 = vsub.s32 %v779, 127
        %v781 = vand.u32 2147483647, %v459
        %v782 = vand.u32 %v781, 8388607
        %v783 = vor.u32 %v782, 8388608
        %v784 = vsub.s32 0, %v783
        %v785 = vadd.s32 %v780, 1
        %vm786 = vcmp.gt.s32.totalorder %v785, 0
        %v787 = vsel %vm786, %v785, 0
        %v788 = vshrl.u32 %v787, 5
        %v789 = vand.u32 %v787, 31
        %v790 = vsub.s32 32, %v789
        %v791 = vshrl.u32 683565275, %v790
        %v792 = vshll.u32 683565275, %v789
        %v793 = vshrl.u32 2475754826, %v790
        %v794 = vor.u32 %v792, %v793
        %v795 = vshll.u32 2475754826, %v789
        %v796 = vshrl.u32 2131351028, %v790
        %v797 = vor.u32 %v795, %v796
        %v798 = vshll.u32 2131351028, %v789
        %v799 = vshrl.u32 2102212464, %v790
        %v800 = vor.u32 %v798, %v799
        %v801 = vshll.u32 2102212464, %v789
        %v802 = vshrl.u32 920167782, %v790
        %v803 = vor.u32 %v801, %v802
        %v804 = vshll.u32 920167782, %v789
        %v805 = vshrl.u32 1326507024, %v790
        %v806 = vor.u32 %v804, %v805
        %vm807 = vcmp.lt.s32.totalorder %v788, 1
        %vm808 = vcmp.lt.s32.totalorder %v788, 2
        %vm809 = vcmp.lt.s32.totalorder %v788, 3
        %vm810 = vcmp.lt.s32.totalorder %v788, 4
        %v811 = vsel %vm807, %v791, %v794
        %v812 = vsel %vm810, %v800, 2102212464
        %v813 = vsel %vm809, %v797, %v812
        %v814 = vsel %vm808, %v811, %v813
        %v815 = vsel %vm807, %v794, %v797
        %v816 = vsel %vm810, %v803, 920167782
        %v817 = vsel %vm809, %v800, %v816
        %v818 = vsel %vm808, %v815, %v817
        %v819 = vsel %vm807, %v797, %v800
        %v820 = vsel %vm810, %v806, 1326507024
        %v821 = vsel %vm809, %v803, %v820
        %v822 = vsel %vm808, %v819, %v821
        %v823 = vshll.u32 %v783, 8
        %v824 = vand.u32 %v823, 65535
        %v825 = vshrl.u32 %v823, 16
        %v826 = vand.u32 %v822, 65535
        %v827 = vshrl.u32 %v822, 16
        %v828 = vmul.u32 %v824, %v826
        %v829 = vmul.u32 %v824, %v827
        %v830 = vmul.u32 %v825, %v826
        %v831 = vmul.u32 %v825, %v827
        %v832 = vshll.u32 %v829, 16
        %v833 = vshrl.u32 %v829, 16
        %v834 = vshll.u32 %v830, 16
        %v835 = vshrl.u32 %v830, 16
        %vm836 = vc.u32 %v828, %v832
        %v837 = vsel %vm836, 1, 0
        %v838 = vadd.s32 %v828, %v832
        %v839 = vadd.s32 %v831, %v837
        %vm840 = vc.u32 %v838, %v834
        %v841 = vsel %vm840, 1, 0
        %v842 = vadd.s32 %v838, %v834
        %v843 = vadd.s32 %v839, %v841
        %v844 = vadd.s32 %v843, %v833
        %v845 = vadd.s32 %v844, %v835
        %v846 = vand.u32 %v823, 65535
        %v847 = vshrl.u32 %v823, 16
        %v848 = vand.u32 %v818, 65535
        %v849 = vshrl.u32 %v818, 16
        %v850 = vmul.u32 %v846, %v848
        %v851 = vmul.u32 %v846, %v849
        %v852 = vmul.u32 %v847, %v848
        %v853 = vmul.u32 %v847, %v849
        %v854 = vshll.u32 %v851, 16
        %v855 = vshrl.u32 %v851, 16
        %v856 = vshll.u32 %v852, 16
        %v857 = vshrl.u32 %v852, 16
        %vm858 = vc.u32 %v850, %v854
        %v859 = vsel %vm858, 1, 0
        %v860 = vadd.s32 %v850, %v854
        %v861 = vadd.s32 %v853, %v859
        %vm862 = vc.u32 %v860, %v856
        %v863 = vsel %vm862, 1, 0
        %v864 = vadd.s32 %v860, %v856
        %v865 = vadd.s32 %v861, %v863
        %v866 = vadd.s32 %v865, %v855
        %v867 = vadd.s32 %v866, %v857
        %v868 = vmul.u32 %v823, %v814
        %v869 = vadd.s32 %v845, %v864
        %vm870 = vc.u32 %v845, %v864
        %v871 = vadd.s32 %v867, 1
        %v872 = vsel %vm870, %v871, %v867
        %v873 = vadd.s32 %v868, %v872
        %v874 = vadd.s32 %v873, 536870912
        %v875 = vshrl.u32 %v874, 30
        %v876 = vshll.u32 %v875, 30
        %v877 = vsub.s32 %v873, %v876
        %vm878 = vcmp.lt.s32.totalorder %v877, 0
        %v879 = vsub.s32 0, %v877
        %v880 = vsel %vm878, %v879, %v877
        %v881 = vclz %v880
        %v882 = vsub.s32 %v881, 2
        %vm883 = vcmp.gt.s32.totalorder 0, %v882
        %v884 = vsel %vm883, 0, %v882
        %v885 = vsub.s32 32, %v884
        %v886 = vshll.u32 %v877, %v884
        %v887 = vshrl.u32 %v869, %v885
        %v888 = vor.u32 %v886, %v887
        %v889 = vsub.s32 4294967266, %v884
        %v890 = vadd.s32 %v889, 127
        %v891 = vshll.u32 %v890, 23
        %v892 = vor.u32 4788187, %v891
        %v893 = vand.u32 2147483647, %v892
        %v895 = vcvt.s32.f32 %v888
        %v896 = vmul.f32 %v895, %v893
        %v897 = vxor.u32 %v896, 2147483648
        %v898 = vsel %vm777, %v897, %v896
        %v899 = vsub.s32 4, %v875
        %v900 = vsel %vm777, %v899, %v875
        %v901 = vsel %vm776, %v459, %v898
        %v902 = vsel %vm776, 0, %v900
        %v903 = vmul.f32 %v901, %v901
        %v904 = vmul.f32 %v903, -0.001358992
        %v905 = vadd.f32 %v904, 0.041655596
        %v906 = vmul.f32 %v903, %v905
        %v907 = vadd.f32 %v906, -0.4999988
        %v908 = vmul.f32 %v903, %v907
        %v909 = vadd.f32 1.0, %v908
        %v910 = vmul.f32 %v901, %v901
        %v911 = vmul.f32 %v910, -0.00019511016
        %v912 = vadd.f32 %v911, 0.008332121
        %v913 = vmul.f32 %v910, %v912
        %v914 = vadd.f32 %v913, -0.16666654
        %v915 = vmul.f32 %v910, %v914
        %v916 = vadd.f32 %v915, 1.0
        %v917 = vmul.f32 %v916, %v901
        %vm918 = vweird.f32 %v459
        %v919 = vadd.s32 %v902, 3
        %v920 = vand.u32 %v919, 3
        %vm921 = vcmp.lt.s32.totalorder %v920, 2
        %vm922 = vcmp.eq.s32.totalorder %v920, 0
        %v923 = vxor.u32 %v917, 2147483648
        %v924 = vsel %vm922, %v909, %v923
        %vm925 = vcmp.eq.s32.totalorder %v920, 2
        %v926 = vxor.u32 %v909, 2147483648
        %v927 = vsel %vm925, %v926, %v917
        %v928 = vsel %vm921, %v924, %v927
        %v929 = vsel %vm918, nan, %v928
        %v930 = vand.u32 2147483647, %v460
        %vm931 = vcmp.le.f32.partialorder %v930, 0.7853982
        %vm932 = vcmp.lt.s32.totalorder %v460, 0
        %v933 = vand.u32 %v460, 2139095040
        %v934 = vshrl.u32 %v933, 23
        %v935 = vsub.s32 %v934, 127
        %v936 = vand.u32 2147483647, %v460
        %v937 = vand.u32 %v936, 8388607
        %v938 = vor.u32 %v937, 8388608
        %v939 = vsub.s32 0, %v938
        %v940 = vadd.s32 %v935, 1
        %vm941 = vcmp.gt.s32.totalorder %v940, 0
        %v942 = vsel %vm941, %v940, 0
        %v943 = vshrl.u32 %v942, 5
        %v944 = vand.u32 %v942, 31
        %v945 = vsub.s32 32, %v944
        %v946 = vshrl.u32 683565275, %v945
        %v947 = vshll.u32 683565275, %v944
        %v948 = vshrl.u32 2475754826, %v945
        %v949 = vor.u32 %v947, %v948
        %v950 = vshll.u32 2475754826, %v944
        %v951 = vshrl.u32 2131351028, %v945
        %v952 = vor.u32 %v950, %v951
        %v953 = vshll.u32 2131351028, %v944
        %v954 = vshrl.u32 2102212464, %v945
        %v955 = vor.u32 %v953, %v954
        %v956 = vshll.u32 2102212464, %v944
        %v957 = vshrl.u32 920167782, %v945
        %v958 = vor.u32 %v956, %v957
        %v959 = vshll.u32 920167782, %v944
        %v960 = vshrl.u32 1326507024, %v945
        %v961 = vor.u32 %v959, %v960
        %vm962 = vcmp.lt.s32.totalorder %v943, 1
        %vm963 = vcmp.lt.s32.totalorder %v943, 2
        %vm964 = vcmp.lt.s32.totalorder %v943, 3
        %vm965 = vcmp.lt.s32.totalorder %v943, 4
        %v966 = vsel %vm962, %v946, %v949
        %v967 = vsel %vm965, %v955, 2102212464
        %v968 = vsel %vm964, %v952, %v967
        %v969 = vsel %vm963, %v966, %v968
        %v970 = vsel %vm962, %v949, %v952
        %v971 = vsel %vm965, %v958, 920167782
        %v972 = vsel %vm964, %v955, %v971
        %v973 = vsel %vm963, %v970, %v972
        %v974 = vsel %vm962, %v952, %v955
        %v975 = vsel %vm965, %v961, 1326507024
        %v976 = vsel %vm964, %v958, %v975
        %v977 = vsel %vm963, %v974, %v976
        %v978 = vshll.u32 %v938, 8
        %v979 = vand.u32 %v978, 65535
        %v980 = vshrl.u32 %v978, 16
        %v981 = vand.u32 %v977, 65535
        %v982 = vshrl.u32 %v977, 16
        %v983 = vmul.u32 %v979, %v981
        %v984 = vmul.u32 %v979, %v982
        %v985 = vmul.u32 %v980, %v981
        %v986 = vmul.u32 %v980, %v982
        %v987 = vshll.u32 %v984, 16
        %v988 = vshrl.u32 %v984, 16
        %v989 = vshll.u32 %v985, 16
        %v990 = vshrl.u32 %v985, 16
        %vm991 = vc.u32 %v983, %v987
        %v992 = vsel %vm991, 1, 0
        %v993 = vadd.s32 %v983, %v987
        %v994 = vadd.s32 %v986, %v992
        %vm995 = vc.u32 %v993, %v989
        %v996 = vsel %vm995, 1, 0
        %v997 = vadd.s32 %v993, %v989
        %v998 = vadd.s32 %v994, %v996
        %v999 = vadd.s32 %v998, %v988
        %v1000 = vadd.s32 %v999, %v990
        %v1001 = vand.u32 %v978, 65535
        %v1002 = vshrl.u32 %v978, 16
        %v1003 = vand.u32 %v973, 65535
        %v1004 = vshrl.u32 %v973, 16
        %v1005 = vmul.u32 %v1001, %v1003
        %v1006 = vmul.u32 %v1001, %v1004
        %v1007 = vmul.u32 %v1002, %v1003
        %v1008 = vmul.u32 %v1002, %v1004
        %v1009 = vshll.u32 %v1006, 16
        %v1010 = vshrl.u32 %v1006, 16
        %v1011 = vshll.u32 %v1007, 16
        %v1012 = vshrl.u32 %v1007, 16
        %vm1013 = vc.u32 %v1005, %v1009
        %v1014 = vsel %vm1013, 1, 0
        %v1015 = vadd.s32 %v1005, %v1009
        %v1016 = vadd.s32 %v1008, %v1014
        %vm1017 = vc.u32 %v1015, %v1011
        %v1018 = vsel %vm1017, 1, 0
        %v1019 = vadd.s32 %v1015, %v1011
        %v1020 = vadd.s32 %v1016, %v1018
        %v1021 = vadd.s32 %v1020, %v1010
        %v1022 = vadd.s32 %v1021, %v1012
        %v1023 = vmul.u32 %v978, %v969
        %v1024 = vadd.s32 %v1000, %v1019
        %vm1025 = vc.u32 %v1000, %v1019
        %v1026 = vadd.s32 %v1022, 1
        %v1027 = vsel %vm1025, %v1026, %v1022
        %v1028 = vadd.s32 %v1023, %v1027
        %v1029 = vadd.s32 %v1028, 536870912
        %v1030 = vshrl.u32 %v1029, 30
        %v1031 = vshll.u32 %v1030, 30
        %v1032 = vsub.s32 %v1028, %v1031
        %vm1033 = vcmp.lt.s32.totalorder %v1032, 0
        %v1034 = vsub.s32 0, %v1032
        %v1035 = vsel %vm1033, %v1034, %v1032
        %v1036 = vclz %v1035
        %v1037 = vsub.s32 %v1036, 2
        %vm1038 = vcmp.gt.s32.totalorder 0, %v1037
        %v1039 = vsel %vm1038, 0, %v1037
        %v1040 = vsub.s32 32, %v1039
        %v1041 = vshll.u32 %v1032, %v1039
        %v1042 = vshrl.u32 %v1024, %v1040
        %v1043 = vor.u32 %v1041, %v1042
        %v1044 = vsub.s32 4294967266, %v1039
        %v1045 = vadd.s32 %v1044, 127
        %v1046 = vshll.u32 %v1045, 23
        %v1047 = vor.u32 4788187, %v1046
        %v1048 = vand.u32 2147483647, %v1047
        %v1050 = vcvt.s32.f32 %v1043
        %v1051 = vmul.f32 %v1050, %v1048
        %v1052 = vxor.u32 %v1051, 2147483648
        %v1053 = vsel %vm932, %v1052, %v1051
        %v1054 = vsub.s32 4, %v1030
        %v1055 = vsel %vm932, %v1054, %v1030
        %v1056 = vsel %vm931, %v460, %v1053
        %v1057 = vsel %vm931, 0, %v1055
        %v1058 = vmul.f32 %v1056, %v1056
        %v1059 = vmul.f32 %v1058, -0.001358992
        %v1060 = vadd.f32 %v1059, 0.041655596
        %v1061 = vmul.f32 %v1058, %v1060
        %v1062 = vadd.f32 %v1061, -0.4999988
        %v1063 = vmul.f32 %v1058, %v1062
        %v1064 = vadd.f32 1.0, %v1063
        %v1065 = vmul.f32 %v1056, %v1056
        %v1066 = vmul.f32 %v1065, -0.00019511016
        %v1067 = vadd.f32 %v1066, 0.008332121
        %v1068 = vmul.f32 %v1065, %v1067
        %v1069 = vadd.f32 %v1068, -0.16666654
        %v1070 = vmul.f32 %v1065, %v1069
        %v1071 = vadd.f32 %v1070, 1.0
        %v1072 = vmul.f32 %v1071, %v1056
        %vm1073 = vweird.f32 %v460
        %v1074 = vadd.s32 %v1057, 3
        %v1075 = vand.u32 %v1074, 3
        %vm1076 = vcmp.lt.s32.totalorder %v1075, 2
        %vm1077 = vcmp.eq.s32.totalorder %v1075, 0
        %v1078 = vxor.u32 %v1072, 2147483648
        %v1079 = vsel %vm1077, %v1064, %v1078
        %vm1080 = vcmp.eq.s32.totalorder %v1075, 2
        %v1081 = vxor.u32 %v1064, 2147483648
        %v1082 = vsel %vm1080, %v1081, %v1072
        %v1083 = vsel %vm1076, %v1079, %v1082
        %v1084 = vsel %vm1073, nan, %v1083
        %v1085 = vand.u32 2147483647, %v461
        %vm1086 = vcmp.le.f32.partialorder %v1085, 0.7853982
        %vm1087 = vcmp.lt.s32.totalorder %v461, 0
        %v1088 = vand.u32 %v461, 2139095040
        %v1089 = vshrl.u32 %v1088, 23
        %v1090 = vsub.s32 %v1089, 127
        %v1091 = vand.u32 2147483647, %v461
        %v1092 = vand.u32 %v1091, 8388607
        %v1093 = vor.u32 %v1092, 8388608
        %v1094 = vsub.s32 0, %v1093
        %v1095 = vadd.s32 %v1090, 1
        %vm1096 = vcmp.gt.s32.totalorder %v1095, 0
        %v1097 = vsel %vm1096, %v1095, 0
        %v1098 = vshrl.u32 %v1097, 5
        %v1099 = vand.u32 %v1097, 31
        %v1100 = vsub.s32 32, %v1099
        %v1101 = vshrl.u32 683565275, %v1100
        %v1102 = vshll.u32 683565275, %v1099
        %v1103 = vshrl.u32 2475754826, %v1100
        %v1104 = vor.u32 %v1102, %v1103
        %v1105 = vshll.u32 2475754826, %v1099
        %v1106 = vshrl.u32 2131351028, %v1100
        %v1107 = vor.u32 %v1105, %v1106
        %v1108 = vshll.u32 2131351028, %v1099
        %v1109 = vshrl.u32 2102212464, %v1100
        %v1110 = vor.u32 %v1108, %v1109
        %v1111 = vshll.u32 2102212464, %v1099
        %v1112 = vshrl.u32 920167782, %v1100
        %v1113 = vor.u32 %v1111, %v1112
        %v1114 = vshll.u32 920167782, %v1099
        %v1115 = vshrl.u32 1326507024, %v1100
        %v1116 = vor.u32 %v1114, %v1115
        %vm1117 = vcmp.lt.s32.totalorder %v1098, 1
        %vm1118 = vcmp.lt.s32.totalorder %v1098, 2
        %vm1119 = vcmp.lt.s32.totalorder %v1098, 3
        %vm1120 = vcmp.lt.s32.totalorder %v1098, 4
        %v1121 = vsel %vm1117, %v1101, %v1104
        %v1122 = vsel %vm1120, %v1110, 2102212464
        %v1123 = vsel %vm1119, %v1107, %v1122
        %v1124 = vsel %vm1118, %v1121, %v1123
        %v1125 = vsel %vm1117, %v1104, %v1107
        %v1126 = vsel %vm1120, %v1113, 920167782
        %v1127 = vsel %vm1119, %v1110, %v1126
        %v1128 = vsel %vm1118, %v1125, %v1127
        %v1129 = vsel %vm1117, %v1107, %v1110
        %v1130 = vsel %vm1120, %v1116, 1326507024
        %v1131 = vsel %vm1119, %v1113, %v1130
        %v1132 = vsel %vm1118, %v1129, %v1131
        %v1133 = vshll.u32 %v1093, 8
        %v1134 = vand.u32 %v1133, 65535
        %v1135 = vshrl.u32 %v1133, 16
        %v1136 = vand.u32 %v1132, 65535
        %v1137 = vshrl.u32 %v1132, 16
        %v1138 = vmul.u32 %v1134, %v1136
        %v1139 = vmul.u32 %v1134, %v1137
        %v1140 = vmul.u32 %v1135, %v1136
        %v1141 = vmul.u32 %v1135, %v1137
        %v1142 = vshll.u32 %v1139, 16
        %v1143 = vshrl.u32 %v1139, 16
        %v1144 = vshll.u32 %v1140, 16
        %v1145 = vshrl.u32 %v1140, 16
        %vm1146 = vc.u32 %v1138, %v1142
        %v1147 = vsel %vm1146, 1, 0
        %v1148 = vadd.s32 %v1138, %v1142
        %v1149 = vadd.s32 %v1141, %v1147
        %vm1150 = vc.u32 %v1148, %v1144
        %v1151 = vsel %vm1150, 1, 0
        %v1152 = vadd.s32 %v1148, %v1144
        %v1153 = vadd.s32 %v1149, %v1151
        %v1154 = vadd.s32 %v1153, %v1143
        %v1155 = vadd.s32 %v1154, %v1145
        %v1156 = vand.u32 %v1133, 65535
        %v1157 = vshrl.u32 %v1133, 16
        %v1158 = vand.u32 %v1128, 65535
        %v1159 = vshrl.u32 %v1128, 16
        %v1160 = vmul.u32 %v1156, %v1158
        %v1161 = vmul.u32 %v1156, %v1159
        %v1162 = vmul.u32 %v1157, %v1158
        %v1163 = vmul.u32 %v1157, %v1159
        %v1164 = vshll.u32 %v1161, 16
        %v1165 = vshrl.u32 %v1161, 16
        %v1166 = vshll.u32 %v1162, 16
        %v1167 = vshrl.u32 %v1162, 16
        %vm1168 = vc.u32 %v1160, %v1164
        %v1169 = vsel %vm1168, 1, 0
        %v1170 = vadd.s32 %v1160, %v1164
        %v1171 = vadd.s32 %v1163, %v1169
        %vm1172 = vc.u32 %v1170, %v1166
        %v1173 = vsel %vm1172, 1, 0
        %v1174 = vadd.s32 %v1170, %v1166
        %v1175 = vadd.s32 %v1171, %v1173
        %v1176 = vadd.s32 %v1175, %v1165
        %v1177 = vadd.s32 %v1176, %v1167
        %v1178 = vmul.u32 %v1133, %v1124
        %v1179 = vadd.s32 %v1155, %v1174
        %vm1180 = vc.u32 %v1155, %v1174
        %v1181 = vadd.s32 %v1177, 1
        %v1182 = vsel %vm1180, %v1181, %v1177
        %v1183 = vadd.s32 %v1178, %v1182
        %v1184 = vadd.s32 %v1183, 536870912
        %v1185 = vshrl.u32 %v1184, 30
        %v1186 = vshll.u32 %v1185, 30
        %v1187 = vsub.s32 %v1183, %v1186
        %vm1188 = vcmp.lt.s32.totalorder %v1187, 0
        %v1189 = vsub.s32 0, %v1187
        %v1190 = vsel %vm1188, %v1189, %v1187
        %v1191 = vclz %v1190
        %v1192 = vsub.s32 %v1191, 2
        %vm1193 = vcmp.gt.s32.totalorder 0, %v1192
        %v1194 = vsel %vm1193, 0, %v1192
        %v1195 = vsub.s32 32, %v1194
        %v1196 = vshll.u32 %v1187, %v1194
        %v1197 = vshrl.u32 %v1179, %v1195
        %v1198 = vor.u32 %v1196, %v1197
        %v1199 = vsub.s32 4294967266, %v1194
        %v1200 = vadd.s32 %v1199, 127
        %v1201 = vshll.u32 %v1200, 23
        %v1202 = vor.u32 4788187, %v1201
        %v1203 = vand.u32 2147483647, %v1202
        %v1205 = vcvt.s32.f32 %v1198
        %v1206 = vmul.f32 %v1205, %v1203
        %v1207 = vxor.u32 %v1206, 2147483648
        %v1208 = vsel %vm1087, %v1207, %v1206
        %v1209 = vsub.s32 4, %v1185
        %v1210 = vsel %vm1087, %v1209, %v1185
        %v1211 = vsel %vm1086, %v461, %v1208
        %v1212 = vsel %vm1086, 0, %v1210
        %v1213 = vmul.f32 %v1211, %v1211
        %v1214 = vmul.f32 %v1213, -0.001358992
        %v1215 = vadd.f32 %v1214, 0.041655596
        %v1216 = vmul.f32 %v1213, %v1215
        %v1217 = vadd.f32 %v1216, -0.4999988
        %v1218 = vmul.f32 %v1213, %v1217
        %v1219 = vadd.f32 1.0, %v1218
        %v1220 = vmul.f32 %v1211, %v1211
        %v1221 = vmul.f32 %v1220, -0.00019511016
        %v1222 = vadd.f32 %v1221, 0.008332121
        %v1223 = vmul.f32 %v1220, %v1222
        %v1224 = vadd.f32 %v1223, -0.16666654
        %v1225 = vmul.f32 %v1220, %v1224
        %v1226 = vadd.f32 %v1225, 1.0
        %v1227 = vmul.f32 %v1226, %v1211
        %vm1228 = vweird.f32 %v461
        %v1229 = vadd.s32 %v1212, 3
        %v1230 = vand.u32 %v1229, 3
        %vm1231 = vcmp.lt.s32.totalorder %v1230, 2
        %vm1232 = vcmp.eq.s32.totalorder %v1230, 0
        %v1233 = vxor.u32 %v1227, 2147483648
        %v1234 = vsel %vm1232, %v1219, %v1233
        %vm1235 = vcmp.eq.s32.totalorder %v1230, 2
        %v1236 = vxor.u32 %v1219, 2147483648
        %v1237 = vsel %vm1235, %v1236, %v1227
        %v1238 = vsel %vm1231, %v1234, %v1237
        %v1239 = vsel %vm1228, nan, %v1238
        %v1240 = vand.u32 2147483647, %v462
        %vm1241 = vcmp.le.f32.partialorder %v1240, 0.7853982
        %vm1242 = vcmp.lt.s32.totalorder %v462, 0
        %v1243 = vand.u32 %v462, 2139095040
        %v1244 = vshrl.u32 %v1243, 23
        %v1245 = vsub.s32 %v1244, 127
        %v1246 = vand.u32 2147483647, %v462
        %v1247 = vand.u32 %v1246, 8388607
        %v1248 = vor.u32 %v1247, 8388608
        %v1249 = vsub.s32 0, %v1248
        %v1250 = vadd.s32 %v1245, 1
        %vm1251 = vcmp.gt.s32.totalorder %v1250, 0
        %v1252 = vsel %vm1251, %v1250, 0
        %v1253 = vshrl.u32 %v1252, 5
        %v1254 = vand.u32 %v1252, 31
        %v1255 = vsub.s32 32, %v1254
        %v1256 = vshrl.u32 683565275, %v1255
        %v1257 = vshll.u32 683565275, %v1254
        %v1258 = vshrl.u32 2475754826, %v1255
        %v1259 = vor.u32 %v1257, %v1258
        %v1260 = vshll.u32 2475754826, %v1254
        %v1261 = vshrl.u32 2131351028, %v1255
        %v1262 = vor.u32 %v1260, %v1261
        %v1263 = vshll.u32 2131351028, %v1254
        %v1264 = vshrl.u32 2102212464, %v1255
        %v1265 = vor.u32 %v1263, %v1264
        %v1266 = vshll.u32 2102212464, %v1254
        %v1267 = vshrl.u32 920167782, %v1255
        %v1268 = vor.u32 %v1266, %v1267
        %v1269 = vshll.u32 920167782, %v1254
        %v1270 = vshrl.u32 1326507024, %v1255
        %v1271 = vor.u32 %v1269, %v1270
        %vm1272 = vcmp.lt.s32.totalorder %v1253, 1
        %vm1273 = vcmp.lt.s32.totalorder %v1253, 2
        %vm1274 = vcmp.lt.s32.totalorder %v1253, 3
        %vm1275 = vcmp.lt.s32.totalorder %v1253, 4
        %v1276 = vsel %vm1272, %v1256, %v1259
        %v1277 = vsel %vm1275, %v1265, 2102212464
        %v1278 = vsel %vm1274, %v1262, %v1277
        %v1279 = vsel %vm1273, %v1276, %v1278
        %v1280 = vsel %vm1272, %v1259, %v1262
        %v1281 = vsel %vm1275, %v1268, 920167782
        %v1282 = vsel %vm1274, %v1265, %v1281
        %v1283 = vsel %vm1273, %v1280, %v1282
        %v1284 = vsel %vm1272, %v1262, %v1265
        %v1285 = vsel %vm1275, %v1271, 1326507024
        %v1286 = vsel %vm1274, %v1268, %v1285
        %v1287 = vsel %vm1273, %v1284, %v1286
        %v1288 = vshll.u32 %v1248, 8
        %v1289 = vand.u32 %v1288, 65535
        %v1290 = vshrl.u32 %v1288, 16
        %v1291 = vand.u32 %v1287, 65535
        %v1292 = vshrl.u32 %v1287, 16
        %v1293 = vmul.u32 %v1289, %v1291
        %v1294 = vmul.u32 %v1289, %v1292
        %v1295 = vmul.u32 %v1290, %v1291
        %v1296 = vmul.u32 %v1290, %v1292
        %v1297 = vshll.u32 %v1294, 16
        %v1298 = vshrl.u32 %v1294, 16
        %v1299 = vshll.u32 %v1295, 16
        %v1300 = vshrl.u32 %v1295, 16
        %vm1301 = vc.u32 %v1293, %v1297
        %v1302 = vsel %vm1301, 1, 0
        %v1303 = vadd.s32 %v1293, %v1297
        %v1304 = vadd.s32 %v1296, %v1302
        %vm1305 = vc.u32 %v1303, %v1299
        %v1306 = vsel %vm1305, 1, 0
        %v1307 = vadd.s32 %v1303, %v1299
        %v1308 = vadd.s32 %v1304, %v1306
        %v1309 = vadd.s32 %v1308, %v1298
        %v1310 = vadd.s32 %v1309, %v1300
        %v1311 = vand.u32 %v1288, 65535
        %v1312 = vshrl.u32 %v1288, 16
        %v1313 = vand.u32 %v1283, 65535
        %v1314 = vshrl.u32 %v1283, 16
        %v1315 = vmul.u32 %v1311, %v1313
        %v1316 = vmul.u32 %v1311, %v1314
        %v1317 = vmul.u32 %v1312, %v1313
        %v1318 = vmul.u32 %v1312, %v1314
        %v1319 = vshll.u32 %v1316, 16
        %v1320 = vshrl.u32 %v1316, 16
        %v1321 = vshll.u32 %v1317, 16
        %v1322 = vshrl.u32 %v1317, 16
        %vm1323 = vc.u32 %v1315, %v1319
        %v1324 = vsel %vm1323, 1, 0
        %v1325 = vadd.s32 %v1315, %v1319
        %v1326 = vadd.s32 %v1318, %v1324
        %vm1327 = vc.u32 %v1325, %v1321
        %v1328 = vsel %vm1327, 1, 0
        %v1329 = vadd.s32 %v1325, %v1321
        %v1330 = vadd.s32 %v1326, %v1328
        %v1331 = vadd.s32 %v1330, %v1320
        %v1332 = vadd.s32 %v1331, %v1322
        %v1333 = vmul.u32 %v1288, %v1279
        %v1334 = vadd.s32 %v1310, %v1329
        %vm1335 = vc.u32 %v1310, %v1329
        %v1336 = vadd.s32 %v1332, 1
        %v1337 = vsel %vm1335, %v1336, %v1332
        %v1338 = vadd.s32 %v1333, %v1337
        %v1339 = vadd.s32 %v1338, 536870912
        %v1340 = vshrl.u32 %v1339, 30
        %v1341 = vshll.u32 %v1340, 30
        %v1342 = vsub.s32 %v1338, %v1341
        %vm1343 = vcmp.lt.s32.totalorder %v1342, 0
        %v1344 = vsub.s32 0, %v1342
        %v1345 = vsel %vm1343, %v1344, %v1342
        %v1346 = vclz %v1345
        %v1347 = vsub.s32 %v1346, 2
        %vm1348 = vcmp.gt.s32.totalorder 0, %v1347
        %v1349 = vsel %vm1348, 0, %v1347
        %v1350 = vsub.s32 32, %v1349
        %v1351 = vshll.u32 %v1342, %v1349
        %v1352 = vshrl.u32 %v1334, %v1350
        %v1353 = vor.u32 %v1351, %v1352
        %v1354 = vsub.s32 4294967266, %v1349
        %v1355 = vadd.s32 %v1354, 127
        %v1356 = vshll.u32 %v1355, 23
        %v1357 = vor.u32 4788187, %v1356
        %v1358 = vand.u32 2147483647, %v1357
        %v1360 = vcvt.s32.f32 %v1353
        %v1361 = vmul.f32 %v1360, %v1358
        %v1362 = vxor.u32 %v1361, 2147483648
        %v1363 = vsel %vm1242, %v1362, %v1361
        %v1364 = vsub.s32 4, %v1340
        %v1365 = vsel %vm1242, %v1364, %v1340
        %v1366 = vsel %vm1241, %v462, %v1363
        %v1367 = vsel %vm1241, 0, %v1365
        %v1368 = vmul.f32 %v1366, %v1366
        %v1369 = vmul.f32 %v1368, -0.001358992
        %v1370 = vadd.f32 %v1369, 0.041655596
        %v1371 = vmul.f32 %v1368, %v1370
        %v1372 = vadd.f32 %v1371, -0.4999988
        %v1373 = vmul.f32 %v1368, %v1372
        %v1374 = vadd.f32 1.0, %v1373
        %v1375 = vmul.f32 %v1366, %v1366
        %v1376 = vmul.f32 %v1375, -0.00019511016
        %v1377 = vadd.f32 %v1376, 0.008332121
        %v1378 = vmul.f32 %v1375, %v1377
        %v1379 = vadd.f32 %v1378, -0.16666654
        %v1380 = vmul.f32 %v1375, %v1379
        %v1381 = vadd.f32 %v1380, 1.0
        %v1382 = vmul.f32 %v1381, %v1366
        %vm1383 = vweird.f32 %v462
        %v1384 = vadd.s32 %v1367, 3
        %v1385 = vand.u32 %v1384, 3
        %vm1386 = vcmp.lt.s32.totalorder %v1385, 2
        %vm1387 = vcmp.eq.s32.totalorder %v1385, 0
        %v1388 = vxor.u32 %v1382, 2147483648
        %v1389 = vsel %vm1387, %v1374, %v1388
        %vm1390 = vcmp.eq.s32.totalorder %v1385, 2
        %v1391 = vxor.u32 %v1374, 2147483648
        %v1392 = vsel %vm1390, %v1391, %v1382
        %v1393 = vsel %vm1386, %v1389, %v1392
        %v1394 = vsel %vm1383, nan, %v1393
        %v1395 = vand.u32 2147483647, %v463
        %vm1396 = vcmp.le.f32.partialorder %v1395, 0.7853982
        %vm1397 = vcmp.lt.s32.totalorder %v463, 0
        %v1398 = vand.u32 %v463, 2139095040
        %v1399 = vshrl.u32 %v1398, 23
        %v1400 = vsub.s32 %v1399, 127
        %v1401 = vand.u32 2147483647, %v463
        %v1402 = vand.u32 %v1401, 8388607
        %v1403 = vor.u32 %v1402, 8388608
        %v1404 = vsub.s32 0, %v1403
        %v1405 = vadd.s32 %v1400, 1
        %vm1406 = vcmp.gt.s32.totalorder %v1405, 0
        %v1407 = vsel %vm1406, %v1405, 0
        %v1408 = vshrl.u32 %v1407, 5
        %v1409 = vand.u32 %v1407, 31
        %v1410 = vsub.s32 32, %v1409
        %v1411 = vshrl.u32 683565275, %v1410
        %v1412 = vshll.u32 683565275, %v1409
        %v1413 = vshrl.u32 2475754826, %v1410
        %v1414 = vor.u32 %v1412, %v1413
        %v1415 = vshll.u32 2475754826, %v1409
        %v1416 = vshrl.u32 2131351028, %v1410
        %v1417 = vor.u32 %v1415, %v1416
        %v1418 = vshll.u32 2131351028, %v1409
        %v1419 = vshrl.u32 2102212464, %v1410
        %v1420 = vor.u32 %v1418, %v1419
        %v1421 = vshll.u32 2102212464, %v1409
        %v1422 = vshrl.u32 920167782, %v1410
        %v1423 = vor.u32 %v1421, %v1422
        %v1424 = vshll.u32 920167782, %v1409
        %v1425 = vshrl.u32 1326507024, %v1410
        %v1426 = vor.u32 %v1424, %v1425
        %vm1427 = vcmp.lt.s32.totalorder %v1408, 1
        %vm1428 = vcmp.lt.s32.totalorder %v1408, 2
        %vm1429 = vcmp.lt.s32.totalorder %v1408, 3
        %vm1430 = vcmp.lt.s32.totalorder %v1408, 4
        %v1431 = vsel %vm1427, %v1411, %v1414
        %v1432 = vsel %vm1430, %v1420, 2102212464
        %v1433 = vsel %vm1429, %v1417, %v1432
        %v1434 = vsel %vm1428, %v1431, %v1433
        %v1435 = vsel %vm1427, %v1414, %v1417
        %v1436 = vsel %vm1430, %v1423, 920167782
        %v1437 = vsel %vm1429, %v1420, %v1436
        %v1438 = vsel %vm1428, %v1435, %v1437
        %v1439 = vsel %vm1427, %v1417, %v1420
        %v1440 = vsel %vm1430, %v1426, 1326507024
        %v1441 = vsel %vm1429, %v1423, %v1440
        %v1442 = vsel %vm1428, %v1439, %v1441
        %v1443 = vshll.u32 %v1403, 8
        %v1444 = vand.u32 %v1443, 65535
        %v1445 = vshrl.u32 %v1443, 16
        %v1446 = vand.u32 %v1442, 65535
        %v1447 = vshrl.u32 %v1442, 16
        %v1448 = vmul.u32 %v1444, %v1446
        %v1449 = vmul.u32 %v1444, %v1447
        %v1450 = vmul.u32 %v1445, %v1446
        %v1451 = vmul.u32 %v1445, %v1447
        %v1452 = vshll.u32 %v1449, 16
        %v1453 = vshrl.u32 %v1449, 16
        %v1454 = vshll.u32 %v1450, 16
        %v1455 = vshrl.u32 %v1450, 16
        %vm1456 = vc.u32 %v1448, %v1452
        %v1457 = vsel %vm1456, 1, 0
        %v1458 = vadd.s32 %v1448, %v1452
        %v1459 = vadd.s32 %v1451, %v1457
        %vm1460 = vc.u32 %v1458, %v1454
        %v1461 = vsel %vm1460, 1, 0
        %v1462 = vadd.s32 %v1458, %v1454
        %v1463 = vadd.s32 %v1459, %v1461
        %v1464 = vadd.s32 %v1463, %v1453
        %v1465 = vadd.s32 %v1464, %v1455
        %v1466 = vand.u32 %v1443, 65535
        %v1467 = vshrl.u32 %v1443, 16
        %v1468 = vand.u32 %v1438, 65535
        %v1469 = vshrl.u32 %v1438, 16
        %v1470 = vmul.u32 %v1466, %v1468
        %v1471 = vmul.u32 %v1466, %v1469
        %v1472 = vmul.u32 %v1467, %v1468
        %v1473 = vmul.u32 %v1467, %v1469
        %v1474 = vshll.u32 %v1471, 16
        %v1475 = vshrl.u32 %v1471, 16
        %v1476 = vshll.u32 %v1472, 16
        %v1477 = vshrl.u32 %v1472, 16
        %vm1478 = vc.u32 %v1470, %v1474
        %v1479 = vsel %vm1478, 1, 0
        %v1480 = vadd.s32 %v1470, %v1474
        %v1481 = vadd.s32 %v1473, %v1479
        %vm1482 = vc.u32 %v1480, %v1476
        %v1483 = vsel %vm1482, 1, 0
        %v1484 = vadd.s32 %v1480, %v1476
        %v1485 = vadd.s32 %v1481, %v1483
        %v1486 = vadd.s32 %v1485, %v1475
        %v1487 = vadd.s32 %v1486, %v1477
        %v1488 = vmul.u32 %v1443, %v1434
        %v1489 = vadd.s32 %v1465, %v1484
        %vm1490 = vc.u32 %v1465, %v1484
        %v1491 = vadd.s32 %v1487, 1
        %v1492 = vsel %vm1490, %v1491, %v1487
        %v1493 = vadd.s32 %v1488, %v1492
        %v1494 = vadd.s32 %v1493, 536870912
        %v1495 = vshrl.u32 %v1494, 30
        %v1496 = vshll.u32 %v1495, 30
        %v1497 = vsub.s32 %v1493, %v1496
        %vm1498 = vcmp.lt.s32.totalorder %v1497, 0
        %v1499 = vsub.s32 0, %v1497
        %v1500 = vsel %vm1498, %v1499, %v1497
        %v1501 = vclz %v1500
        %v1502 = vsub.s32 %v1501, 2
        %vm1503 = vcmp.gt.s32.totalorder 0, %v1502
        %v1504 = vsel %vm1503, 0, %v1502
        %v1505 = vsub.s32 32, %v1504
        %v1506 = vshll.u32 %v1497, %v1504
        %v1507 = vshrl.u32 %v1489, %v1505
        %v1508 = vor.u32 %v1506, %v1507
        %v1509 = vsub.s32 4294967266, %v1504
        %v1510 = vadd.s32 %v1509, 127
        %v1511 = vshll.u32 %v1510, 23
        %v1512 = vor.u32 4788187, %v1511
        %v1513 = vand.u32 2147483647, %v1512
        %v1515 = vcvt.s32.f32 %v1508
        %v1516 = vmul.f32 %v1515, %v1513
        %v1517 = vxor.u32 %v1516, 2147483648
        %v1518 = vsel %vm1397, %v1517, %v1516
        %v1519 = vsub.s32 4, %v1495
        %v1520 = vsel %vm1397, %v1519, %v1495
        %v1521 = vsel %vm1396, %v463, %v1518
        %v1522 = vsel %vm1396, 0, %v1520
        %v1523 = vmul.f32 %v1521, %v1521
        %v1524 = vmul.f32 %v1523, -0.001358992
        %v1525 = vadd.f32 %v1524, 0.041655596
        %v1526 = vmul.f32 %v1523, %v1525
        %v1527 = vadd.f32 %v1526, -0.4999988
        %v1528 = vmul.f32 %v1523, %v1527
        %v1529 = vadd.f32 1.0, %v1528
        %v1530 = vmul.f32 %v1521, %v1521
        %v1531 = vmul.f32 %v1530, -0.00019511016
        %v1532 = vadd.f32 %v1531, 0.008332121
        %v1533 = vmul.f32 %v1530, %v1532
        %v1534 = vadd.f32 %v1533, -0.16666654
        %v1535 = vmul.f32 %v1530, %v1534
        %v1536 = vadd.f32 %v1535, 1.0
        %v1537 = vmul.f32 %v1536, %v1521
        %vm1538 = vweird.f32 %v463
        %v1539 = vadd.s32 %v1522, 3
        %v1540 = vand.u32 %v1539, 3
        %vm1541 = vcmp.lt.s32.totalorder %v1540, 2
        %vm1542 = vcmp.eq.s32.totalorder %v1540, 0
        %v1543 = vxor.u32 %v1537, 2147483648
        %v1544 = vsel %vm1542, %v1529, %v1543
        %vm1545 = vcmp.eq.s32.totalorder %v1540, 2
        %v1546 = vxor.u32 %v1529, 2147483648
        %v1547 = vsel %vm1545, %v1546, %v1537
        %v1548 = vsel %vm1541, %v1544, %v1547
        %v1549 = vsel %vm1538, nan, %v1548
        %v1550 = vand.u32 2147483647, %v464
        %vm1551 = vcmp.le.f32.partialorder %v1550, 0.7853982
        %vm1552 = vcmp.lt.s32.totalorder %v464, 0
        %v1553 = vand.u32 %v464, 2139095040
        %v1554 = vshrl.u32 %v1553, 23
        %v1555 = vsub.s32 %v1554, 127
        %v1556 = vand.u32 2147483647, %v464
        %v1557 = vand.u32 %v1556, 8388607
        %v1558 = vor.u32 %v1557, 8388608
        %v1559 = vsub.s32 0, %v1558
        %v1560 = vadd.s32 %v1555, 1
        %vm1561 = vcmp.gt.s32.totalorder %v1560, 0
        %v1562 = vsel %vm1561, %v1560, 0
        %v1563 = vshrl.u32 %v1562, 5
        %v1564 = vand.u32 %v1562, 31
        %v1565 = vsub.s32 32, %v1564
        %v1566 = vshrl.u32 683565275, %v1565
        %v1567 = vshll.u32 683565275, %v1564
        %v1568 = vshrl.u32 2475754826, %v1565
        %v1569 = vor.u32 %v1567, %v1568
        %v1570 = vshll.u32 2475754826, %v1564
        %v1571 = vshrl.u32 2131351028, %v1565
        %v1572 = vor.u32 %v1570, %v1571
        %v1573 = vshll.u32 2131351028, %v1564
        %v1574 = vshrl.u32 2102212464, %v1565
        %v1575 = vor.u32 %v1573, %v1574
        %v1576 = vshll.u32 2102212464, %v1564
        %v1577 = vshrl.u32 920167782, %v1565
        %v1578 = vor.u32 %v1576, %v1577
        %v1579 = vshll.u32 920167782, %v1564
        %v1580 = vshrl.u32 1326507024, %v1565
        %v1581 = vor.u32 %v1579, %v1580
        %vm1582 = vcmp.lt.s32.totalorder %v1563, 1
        %vm1583 = vcmp.lt.s32.totalorder %v1563, 2
        %vm1584 = vcmp.lt.s32.totalorder %v1563, 3
        %vm1585 = vcmp.lt.s32.totalorder %v1563, 4
        %v1586 = vsel %vm1582, %v1566, %v1569
        %v1587 = vsel %vm1585, %v1575, 2102212464
        %v1588 = vsel %vm1584, %v1572, %v1587
        %v1589 = vsel %vm1583, %v1586, %v1588
        %v1590 = vsel %vm1582, %v1569, %v1572
        %v1591 = vsel %vm1585, %v1578, 920167782
        %v1592 = vsel %vm1584, %v1575, %v1591
        %v1593 = vsel %vm1583, %v1590, %v1592
        %v1594 = vsel %vm1582, %v1572, %v1575
        %v1595 = vsel %vm1585, %v1581, 1326507024
        %v1596 = vsel %vm1584, %v1578, %v1595
        %v1597 = vsel %vm1583, %v1594, %v1596
        %v1598 = vshll.u32 %v1558, 8
        %v1599 = vand.u32 %v1598, 65535
        %v1600 = vshrl.u32 %v1598, 16
        %v1601 = vand.u32 %v1597, 65535
        %v1602 = vshrl.u32 %v1597, 16
        %v1603 = vmul.u32 %v1599, %v1601
        %v1604 = vmul.u32 %v1599, %v1602
        %v1605 = vmul.u32 %v1600, %v1601
        %v1606 = vmul.u32 %v1600, %v1602
        %v1607 = vshll.u32 %v1604, 16
        %v1608 = vshrl.u32 %v1604, 16
        %v1609 = vshll.u32 %v1605, 16
        %v1610 = vshrl.u32 %v1605, 16
        %vm1611 = vc.u32 %v1603, %v1607
        %v1612 = vsel %vm1611, 1, 0
        %v1613 = vadd.s32 %v1603, %v1607
        %v1614 = vadd.s32 %v1606, %v1612
        %vm1615 = vc.u32 %v1613, %v1609
        %v1616 = vsel %vm1615, 1, 0
        %v1617 = vadd.s32 %v1613, %v1609
        %v1618 = vadd.s32 %v1614, %v1616
        %v1619 = vadd.s32 %v1618, %v1608
        %v1620 = vadd.s32 %v1619, %v1610
        %v1621 = vand.u32 %v1598, 65535
        %v1622 = vshrl.u32 %v1598, 16
        %v1623 = vand.u32 %v1593, 65535
        %v1624 = vshrl.u32 %v1593, 16
        %v1625 = vmul.u32 %v1621, %v1623
        %v1626 = vmul.u32 %v1621, %v1624
        %v1627 = vmul.u32 %v1622, %v1623
        %v1628 = vmul.u32 %v1622, %v1624
        %v1629 = vshll.u32 %v1626, 16
        %v1630 = vshrl.u32 %v1626, 16
        %v1631 = vshll.u32 %v1627, 16
        %v1632 = vshrl.u32 %v1627, 16
        %vm1633 = vc.u32 %v1625, %v1629
        %v1634 = vsel %vm1633, 1, 0
        %v1635 = vadd.s32 %v1625, %v1629
        %v1636 = vadd.s32 %v1628, %v1634
        %vm1637 = vc.u32 %v1635, %v1631
        %v1638 = vsel %vm1637, 1, 0
        %v1639 = vadd.s32 %v1635, %v1631
        %v1640 = vadd.s32 %v1636, %v1638
        %v1641 = vadd.s32 %v1640, %v1630
        %v1642 = vadd.s32 %v1641, %v1632
        %v1643 = vmul.u32 %v1598, %v1589
        %v1644 = vadd.s32 %v1620, %v1639
        %vm1645 = vc.u32 %v1620, %v1639
        %v1646 = vadd.s32 %v1642, 1
        %v1647 = vsel %vm1645, %v1646, %v1642
        %v1648 = vadd.s32 %v1643, %v1647
        %v1649 = vadd.s32 %v1648, 536870912
        %v1650 = vshrl.u32 %v1649, 30
        %v1651 = vshll.u32 %v1650, 30
        %v1652 = vsub.s32 %v1648, %v1651
        %vm1653 = vcmp.lt.s32.totalorder %v1652, 0
        %v1654 = vsub.s32 0, %v1652
        %v1655 = vsel %vm1653, %v1654, %v1652
        %v1656 = vclz %v1655
        %v1657 = vsub.s32 %v1656, 2
        %vm1658 = vcmp.gt.s32.totalorder 0, %v1657
        %v1659 = vsel %vm1658, 0, %v1657
        %v1660 = vsub.s32 32, %v1659
        %v1661 = vshll.u32 %v1652, %v1659
        %v1662 = vshrl.u32 %v1644, %v1660
        %v1663 = vor.u32 %v1661, %v1662
        %v1664 = vsub.s32 4294967266, %v1659
        %v1665 = vadd.s32 %v1664, 127
        %v1666 = vshll.u32 %v1665, 23
        %v1667 = vor.u32 4788187, %v1666
        %v1668 = vand.u32 2147483647, %v1667
        %v1670 = vcvt.s32.f32 %v1663
        %v1671 = vmul.f32 %v1670, %v1668
        %v1672 = vxor.u32 %v1671, 2147483648
        %v1673 = vsel %vm1552, %v1672, %v1671
        %v1674 = vsub.s32 4, %v1650
        %v1675 = vsel %vm1552, %v1674, %v1650
        %v1676 = vsel %vm1551, %v464, %v1673
        %v1677 = vsel %vm1551, 0, %v1675
        %v1678 = vmul.f32 %v1676, %v1676
        %v1679 = vmul.f32 %v1678, -0.001358992
        %v1680 = vadd.f32 %v1679, 0.041655596
        %v1681 = vmul.f32 %v1678, %v1680
        %v1682 = vadd.f32 %v1681, -0.4999988
        %v1683 = vmul.f32 %v1678, %v1682
        %v1684 = vadd.f32 1.0, %v1683
        %v1685 = vmul.f32 %v1676, %v1676
        %v1686 = vmul.f32 %v1685, -0.00019511016
        %v1687 = vadd.f32 %v1686, 0.008332121
        %v1688 = vmul.f32 %v1685, %v1687
        %v1689 = vadd.f32 %v1688, -0.16666654
        %v1690 = vmul.f32 %v1685, %v1689
        %v1691 = vadd.f32 %v1690, 1.0
        %v1692 = vmul.f32 %v1691, %v1676
        %vm1693 = vweird.f32 %v464
        %v1694 = vadd.s32 %v1677, 3
        %v1695 = vand.u32 %v1694, 3
        %vm1696 = vcmp.lt.s32.totalorder %v1695, 2
        %vm1697 = vcmp.eq.s32.totalorder %v1695, 0
        %v1698 = vxor.u32 %v1692, 2147483648
        %v1699 = vsel %vm1697, %v1684, %v1698
        %vm1700 = vcmp.eq.s32.totalorder %v1695, 2
        %v1701 = vxor.u32 %v1684, 2147483648
        %v1702 = vsel %vm1700, %v1701, %v1692
        %v1703 = vsel %vm1696, %v1699, %v1702
        %v1704 = vsel %vm1693, nan, %v1703
        %v1705 = vand.u32 2147483647, %v457
        %vm1706 = vcmp.le.f32.partialorder %v1705, 0.7853982
        %vm1707 = vcmp.lt.s32.totalorder %v457, 0
        %v1708 = vand.u32 %v457, 2139095040
        %v1709 = vshrl.u32 %v1708, 23
        %v1710 = vsub.s32 %v1709, 127
        %v1711 = vand.u32 2147483647, %v457
        %v1712 = vand.u32 %v1711, 8388607
        %v1713 = vor.u32 %v1712, 8388608
        %v1714 = vsub.s32 0, %v1713
        %v1715 = vadd.s32 %v1710, 1
        %vm1716 = vcmp.gt.s32.totalorder %v1715, 0
        %v1717 = vsel %vm1716, %v1715, 0
        %v1718 = vshrl.u32 %v1717, 5
        %v1719 = vand.u32 %v1717, 31
        %v1720 = vsub.s32 32, %v1719
        %v1721 = vshrl.u32 683565275, %v1720
        %v1722 = vshll.u32 683565275, %v1719
        %v1723 = vshrl.u32 2475754826, %v1720
        %v1724 = vor.u32 %v1722, %v1723
        %v1725 = vshll.u32 2475754826, %v1719
        %v1726 = vshrl.u32 2131351028, %v1720
        %v1727 = vor.u32 %v1725, %v1726
        %v1728 = vshll.u32 2131351028, %v1719
        %v1729 = vshrl.u32 2102212464, %v1720
        %v1730 = vor.u32 %v1728, %v1729
        %v1731 = vshll.u32 2102212464, %v1719
        %v1732 = vshrl.u32 920167782, %v1720
        %v1733 = vor.u32 %v1731, %v1732
        %v1734 = vshll.u32 920167782, %v1719
        %v1735 = vshrl.u32 1326507024, %v1720
        %v1736 = vor.u32 %v1734, %v1735
        %vm1737 = vcmp.lt.s32.totalorder %v1718, 1
        %vm1738 = vcmp.lt.s32.totalorder %v1718, 2
        %vm1739 = vcmp.lt.s32.totalorder %v1718, 3
        %vm1740 = vcmp.lt.s32.totalorder %v1718, 4
        %v1741 = vsel %vm1737, %v1721, %v1724
        %v1742 = vsel %vm1740, %v1730, 2102212464
        %v1743 = vsel %vm1739, %v1727, %v1742
        %v1744 = vsel %vm1738, %v1741, %v1743
        %v1745 = vsel %vm1737, %v1724, %v1727
        %v1746 = vsel %vm1740, %v1733, 920167782
        %v1747 = vsel %vm1739, %v1730, %v1746
        %v1748 = vsel %vm1738, %v1745, %v1747
        %v1749 = vsel %vm1737, %v1727, %v1730
        %v1750 = vsel %vm1740, %v1736, 1326507024
        %v1751 = vsel %vm1739, %v1733, %v1750
        %v1752 = vsel %vm1738, %v1749, %v1751
        %v1753 = vshll.u32 %v1713, 8
        %v1754 = vand.u32 %v1753, 65535
        %v1755 = vshrl.u32 %v1753, 16
        %v1756 = vand.u32 %v1752, 65535
        %v1757 = vshrl.u32 %v1752, 16
        %v1758 = vmul.u32 %v1754, %v1756
        %v1759 = vmul.u32 %v1754, %v1757
        %v1760 = vmul.u32 %v1755, %v1756
        %v1761 = vmul.u32 %v1755, %v1757
        %v1762 = vshll.u32 %v1759, 16
        %v1763 = vshrl.u32 %v1759, 16
        %v1764 = vshll.u32 %v1760, 16
        %v1765 = vshrl.u32 %v1760, 16
        %vm1766 = vc.u32 %v1758, %v1762
        %v1767 = vsel %vm1766, 1, 0
        %v1768 = vadd.s32 %v1758, %v1762
        %v1769 = vadd.s32 %v1761, %v1767
        %vm1770 = vc.u32 %v1768, %v1764
        %v1771 = vsel %vm1770, 1, 0
        %v1772 = vadd.s32 %v1768, %v1764
        %v1773 = vadd.s32 %v1769, %v1771
        %v1774 = vadd.s32 %v1773, %v1763
        %v1775 = vadd.s32 %v1774, %v1765
        %v1776 = vand.u32 %v1753, 65535
        %v1777 = vshrl.u32 %v1753, 16
        %v1778 = vand.u32 %v1748, 65535
        %v1779 = vshrl.u32 %v1748, 16
        %v1780 = vmul.u32 %v1776, %v1778
        %v1781 = vmul.u32 %v1776, %v1779
        %v1782 = vmul.u32 %v1777, %v1778
        %v1783 = vmul.u32 %v1777, %v1779
        %v1784 = vshll.u32 %v1781, 16
        %v1785 = vshrl.u32 %v1781, 16
        %v1786 = vshll.u32 %v1782, 16
        %v1787 = vshrl.u32 %v1782, 16
        %vm1788 = vc.u32 %v1780, %v1784
        %v1789 = vsel %vm1788, 1, 0
        %v1790 = vadd.s32 %v1780, %v1784
        %v1791 = vadd.s32 %v1783, %v1789
        %vm1792 = vc.u32 %v1790, %v1786
        %v1793 = vsel %vm1792, 1, 0
        %v1794 = vadd.s32 %v1790, %v1786
        %v1795 = vadd.s32 %v1791, %v1793
        %v1796 = vadd.s32 %v1795, %v1785
        %v1797 = vadd.s32 %v1796, %v1787
        %v1798 = vmul.u32 %v1753, %v1744
        %v1799 = vadd.s32 %v1775, %v1794
        %vm1800 = vc.u32 %v1775, %v1794
        %v1801 = vadd.s32 %v1797, 1
        %v1802 = vsel %vm1800, %v1801, %v1797
        %v1803 = vadd.s32 %v1798, %v1802
        %v1804 = vadd.s32 %v1803, 536870912
        %v1805 = vshrl.u32 %v1804, 30
        %v1806 = vshll.u32 %v1805, 30
        %v1807 = vsub.s32 %v1803, %v1806
        %vm1808 = vcmp.lt.s32.totalorder %v1807, 0
        %v1809 = vsub.s32 0, %v1807
        %v1810 = vsel %vm1808, %v1809, %v1807
        %v1811 = vclz %v1810
        %v1812 = vsub.s32 %v1811, 2
        %vm1813 = vcmp.gt.s32.totalorder 0, %v1812
        %v1814 = vsel %vm1813, 0, %v1812
        %v1815 = vsub.s32 32, %v1814
        %v1816 = vshll.u32 %v1807, %v1814
        %v1817 = vshrl.u32 %v1799, %v1815
        %v1818 = vor.u32 %v1816, %v1817
        %v1819 = vsub.s32 4294967266, %v1814
        %v1820 = vadd.s32 %v1819, 127
        %v1821 = vshll.u32 %v1820, 23
        %v1822 = vor.u32 4788187, %v1821
        %v1823 = vand.u32 2147483647, %v1822
        %v1825 = vcvt.s32.f32 %v1818
        %v1826 = vmul.f32 %v1825, %v1823
        %v1827 = vxor.u32 %v1826, 2147483648
        %v1828 = vsel %vm1707, %v1827, %v1826
        %v1829 = vsub.s32 4, %v1805
        %v1830 = vsel %vm1707, %v1829, %v1805
        %v1831 = vsel %vm1706, %v457, %v1828
        %v1832 = vsel %vm1706, 0, %v1830
        %v1833 = vmul.f32 %v1831, %v1831
        %v1834 = vmul.f32 %v1833, -0.001358992
        %v1835 = vadd.f32 %v1834, 0.041655596
        %v1836 = vmul.f32 %v1833, %v1835
        %v1837 = vadd.f32 %v1836, -0.4999988
        %v1838 = vmul.f32 %v1833, %v1837
        %v1839 = vadd.f32 1.0, %v1838
        %v1840 = vmul.f32 %v1831, %v1831
        %v1841 = vmul.f32 %v1840, -0.00019511016
        %v1842 = vadd.f32 %v1841, 0.008332121
        %v1843 = vmul.f32 %v1840, %v1842
        %v1844 = vadd.f32 %v1843, -0.16666654
        %v1845 = vmul.f32 %v1840, %v1844
        %v1846 = vadd.f32 %v1845, 1.0
        %v1847 = vmul.f32 %v1846, %v1831
        %vm1848 = vweird.f32 %v457
        %v1849 = vand.u32 %v1832, 3
        %vm1850 = vcmp.lt.s32.totalorder %v1849, 2
        %vm1851 = vcmp.eq.s32.totalorder %v1849, 0
        %v1852 = vxor.u32 %v1847, 2147483648
        %v1853 = vsel %vm1851, %v1839, %v1852
        %vm1854 = vcmp.eq.s32.totalorder %v1849, 2
        %v1855 = vxor.u32 %v1839, 2147483648
        %v1856 = vsel %vm1854, %v1855, %v1847
        %v1857 = vsel %vm1850, %v1853, %v1856
        %v1858 = vsel %vm1848, nan, %v1857
        %v1859 = vand.u32 2147483647, %v458
        %vm1860 = vcmp.le.f32.partialorder %v1859, 0.7853982
        %vm1861 = vcmp.lt.s32.totalorder %v458, 0
        %v1862 = vand.u32 %v458, 2139095040
        %v1863 = vshrl.u32 %v1862, 23
        %v1864 = vsub.s32 %v1863, 127
        %v1865 = vand.u32 2147483647, %v458
        %v1866 = vand.u32 %v1865, 8388607
        %v1867 = vor.u32 %v1866, 8388608
        %v1868 = vsub.s32 0, %v1867
        %v1869 = vadd.s32 %v1864, 1
        %vm1870 = vcmp.gt.s32.totalorder %v1869, 0
        %v1871 = vsel %vm1870, %v1869, 0
        %v1872 = vshrl.u32 %v1871, 5
        %v1873 = vand.u32 %v1871, 31
        %v1874 = vsub.s32 32, %v1873
        %v1875 = vshrl.u32 683565275, %v1874
        %v1876 = vshll.u32 683565275, %v1873
        %v1877 = vshrl.u32 2475754826, %v1874
        %v1878 = vor.u32 %v1876, %v1877
        %v1879 = vshll.u32 2475754826, %v1873
        %v1880 = vshrl.u32 2131351028, %v1874
        %v1881 = vor.u32 %v1879, %v1880
        %v1882 = vshll.u32 2131351028, %v1873
        %v1883 = vshrl.u32 2102212464, %v1874
        %v1884 = vor.u32 %v1882, %v1883
        %v1885 = vshll.u32 2102212464, %v1873
        %v1886 = vshrl.u32 920167782, %v1874
        %v1887 = vor.u32 %v1885, %v1886
        %v1888 = vshll.u32 920167782, %v1873
        %v1889 = vshrl.u32 1326507024, %v1874
        %v1890 = vor.u32 %v1888, %v1889
        %vm1891 = vcmp.lt.s32.totalorder %v1872, 1
        %vm1892 = vcmp.lt.s32.totalorder %v1872, 2
        %vm1893 = vcmp.lt.s32.totalorder %v1872, 3
        %vm1894 = vcmp.lt.s32.totalorder %v1872, 4
        %v1895 = vsel %vm1891, %v1875, %v1878
        %v1896 = vsel %vm1894, %v1884, 2102212464
        %v1897 = vsel %vm1893, %v1881, %v1896
        %v1898 = vsel %vm1892, %v1895, %v1897
        %v1899 = vsel %vm1891, %v1878, %v1881
        %v1900 = vsel %vm1894, %v1887, 920167782
        %v1901 = vsel %vm1893, %v1884, %v1900
        %v1902 = vsel %vm1892, %v1899, %v1901
        %v1903 = vsel %vm1891, %v1881, %v1884
        %v1904 = vsel %vm1894, %v1890, 1326507024
        %v1905 = vsel %vm1893, %v1887, %v1904
        %v1906 = vsel %vm1892, %v1903, %v1905
        %v1907 = vshll.u32 %v1867, 8
        %v1908 = vand.u32 %v1907, 65535
        %v1909 = vshrl.u32 %v1907, 16
        %v1910 = vand.u32 %v1906, 65535
        %v1911 = vshrl.u32 %v1906, 16
        %v1912 = vmul.u32 %v1908, %v1910
        %v1913 = vmul.u32 %v1908, %v1911
        %v1914 = vmul.u32 %v1909, %v1910
        %v1915 = vmul.u32 %v1909, %v1911
        %v1916 = vshll.u32 %v1913, 16
        %v1917 = vshrl.u32 %v1913, 16
        %v1918 = vshll.u32 %v1914, 16
        %v1919 = vshrl.u32 %v1914, 16
        %vm1920 = vc.u32 %v1912, %v1916
        %v1921 = vsel %vm1920, 1, 0
        %v1922 = vadd.s32 %v1912, %v1916
        %v1923 = vadd.s32 %v1915, %v1921
        %vm1924 = vc.u32 %v1922, %v1918
        %v1925 = vsel %vm1924, 1, 0
        %v1926 = vadd.s32 %v1922, %v1918
        %v1927 = vadd.s32 %v1923, %v1925
        %v1928 = vadd.s32 %v1927, %v1917
        %v1929 = vadd.s32 %v1928, %v1919
        %v1930 = vand.u32 %v1907, 65535
        %v1931 = vshrl.u32 %v1907, 16
        %v1932 = vand.u32 %v1902, 65535
        %v1933 = vshrl.u32 %v1902, 16
        %v1934 = vmul.u32 %v1930, %v1932
        %v1935 = vmul.u32 %v1930, %v1933
        %v1936 = vmul.u32 %v1931, %v1932
        %v1937 = vmul.u32 %v1931, %v1933
        %v1938 = vshll.u32 %v1935, 16
        %v1939 = vshrl.u32 %v1935, 16
        %v1940 = vshll.u32 %v1936, 16
        %v1941 = vshrl.u32 %v1936, 16
        %vm1942 = vc.u32 %v1934, %v1938
        %v1943 = vsel %vm1942, 1, 0
        %v1944 = vadd.s32 %v1934, %v1938
        %v1945 = vadd.s32 %v1937, %v1943
        %vm1946 = vc.u32 %v1944, %v1940
        %v1947 = vsel %vm1946, 1, 0
        %v1948 = vadd.s32 %v1944, %v1940
        %v1949 = vadd.s32 %v1945, %v1947
        %v1950 = vadd.s32 %v1949, %v1939
        %v1951 = vadd.s32 %v1950, %v1941
        %v1952 = vmul.u32 %v1907, %v1898
        %v1953 = vadd.s32 %v1929, %v1948
        %vm1954 = vc.u32 %v1929, %v1948
        %v1955 = vadd.s32 %v1951, 1
        %v1956 = vsel %vm1954, %v1955, %v1951
        %v1957 = vadd.s32 %v1952, %v1956
        %v1958 = vadd.s32 %v1957, 536870912
        %v1959 = vshrl.u32 %v1958, 30
        %v1960 = vshll.u32 %v1959, 30
        %v1961 = vsub.s32 %v1957, %v1960
        %vm1962 = vcmp.lt.s32.totalorder %v1961, 0
        %v1963 = vsub.s32 0, %v1961
        %v1964 = vsel %vm1962, %v1963, %v1961
        %v1965 = vclz %v1964
        %v1966 = vsub.s32 %v1965, 2
        %vm1967 = vcmp.gt.s32.totalorder 0, %v1966
        %v1968 = vsel %vm1967, 0, %v1966
        %v1969 = vsub.s32 32, %v1968
        %v1970 = vshll.u32 %v1961, %v1968
        %v1971 = vshrl.u32 %v1953, %v1969
        %v1972 = vor.u32 %v1970, %v1971
        %v1973 = vsub.s32 4294967266, %v1968
        %v1974 = vadd.s32 %v1973, 127
        %v1975 = vshll.u32 %v1974, 23
        %v1976 = vor.u32 4788187, %v1975
        %v1977 = vand.u32 2147483647, %v1976
        %v1979 = vcvt.s32.f32 %v1972
        %v1980 = vmul.f32 %v1979, %v1977
        %v1981 = vxor.u32 %v1980, 2147483648
        %v1982 = vsel %vm1861, %v1981, %v1980
        %v1983 = vsub.s32 4, %v1959
        %v1984 = vsel %vm1861, %v1983, %v1959
        %v1985 = vsel %vm1860, %v458, %v1982
        %v1986 = vsel %vm1860, 0, %v1984
        %v1987 = vmul.f32 %v1985, %v1985
        %v1988 = vmul.f32 %v1987, -0.001358992
        %v1989 = vadd.f32 %v1988, 0.041655596
        %v1990 = vmul.f32 %v1987, %v1989
        %v1991 = vadd.f32 %v1990, -0.4999988
        %v1992 = vmul.f32 %v1987, %v1991
        %v1993 = vadd.f32 1.0, %v1992
        %v1994 = vmul.f32 %v1985, %v1985
        %v1995 = vmul.f32 %v1994, -0.00019511016
        %v1996 = vadd.f32 %v1995, 0.008332121
        %v1997 = vmul.f32 %v1994, %v1996
        %v1998 = vadd.f32 %v1997, -0.16666654
        %v1999 = vmul.f32 %v1994, %v1998
        %v2000 = vadd.f32 %v1999, 1.0
        %v2001 = vmul.f32 %v2000, %v1985
        %vm2002 = vweird.f32 %v458
        %v2003 = vand.u32 %v1986, 3
        %vm2004 = vcmp.lt.s32.totalorder %v2003, 2
        %vm2005 = vcmp.eq.s32.totalorder %v2003, 0
        %v2006 = vxor.u32 %v2001, 2147483648
        %v2007 = vsel %vm2005, %v1993, %v2006
        %vm2008 = vcmp.eq.s32.totalorder %v2003, 2
        %v2009 = vxor.u32 %v1993, 2147483648
        %v2010 = vsel %vm2008, %v2009, %v2001
        %v2011 = vsel %vm2004, %v2007, %v2010
        %v2012 = vsel %vm2002, nan, %v2011
        %v2013 = vand.u32 2147483647, %v459
        %vm2014 = vcmp.le.f32.partialorder %v2013, 0.7853982
        %vm2015 = vcmp.lt.s32.totalorder %v459, 0
        %v2016 = vand.u32 %v459, 2139095040
        %v2017 = vshrl.u32 %v2016, 23
        %v2018 = vsub.s32 %v2017, 127
        %v2019 = vand.u32 2147483647, %v459
        %v2020 = vand.u32 %v2019, 8388607
        %v2021 = vor.u32 %v2020, 8388608
        %v2022 = vsub.s32 0, %v2021
        %v2023 = vadd.s32 %v2018, 1
        %vm2024 = vcmp.gt.s32.totalorder %v2023, 0
        %v2025 = vsel %vm2024, %v2023, 0
        %v2026 = vshrl.u32 %v2025, 5
        %v2027 = vand.u32 %v2025, 31
        %v2028 = vsub.s32 32, %v2027
        %v2029 = vshrl.u32 683565275, %v2028
        %v2030 = vshll.u32 683565275, %v2027
        %v2031 = vshrl.u32 2475754826, %v2028
        %v2032 = vor.u32 %v2030, %v2031
        %v2033 = vshll.u32 2475754826, %v2027
        %v2034 = vshrl.u32 2131351028, %v2028
        %v2035 = vor.u32 %v2033, %v2034
        %v2036 = vshll.u32 2131351028, %v2027
        %v2037 = vshrl.u32 2102212464, %v2028
        %v2038 = vor.u32 %v2036, %v2037
        %v2039 = vshll.u32 2102212464, %v2027
        %v2040 = vshrl.u32 920167782, %v2028
        %v2041 = vor.u32 %v2039, %v2040
        %v2042 = vshll.u32 920167782, %v2027
        %v2043 = vshrl.u32 1326507024, %v2028
        %v2044 = vor.u32 %v2042, %v2043
        %vm2045 = vcmp.lt.s32.totalorder %v2026, 1
        %vm2046 = vcmp.lt.s32.totalorder %v2026, 2
        %vm2047 = vcmp.lt.s32.totalorder %v2026, 3
        %vm2048 = vcmp.lt.s32.totalorder %v2026, 4
        %v2049 = vsel %vm2045, %v2029, %v2032
        %v2050 = vsel %vm2048, %v2038, 2102212464
        %v2051 = vsel %vm2047, %v2035, %v2050
        %v2052 = vsel %vm2046, %v2049, %v2051
        %v2053 = vsel %vm2045, %v2032, %v2035
        %v2054 = vsel %vm2048, %v2041, 920167782
        %v2055 = vsel %vm2047, %v2038, %v2054
        %v2056 = vsel %vm2046, %v2053, %v2055
        %v2057 = vsel %vm2045, %v2035, %v2038
        %v2058 = vsel %vm2048, %v2044, 1326507024
        %v2059 = vsel %vm2047, %v2041, %v2058
        %v2060 = vsel %vm2046, %v2057, %v2059
        %v2061 = vshll.u32 %v2021, 8
        %v2062 = vand.u32 %v2061, 65535
        %v2063 = vshrl.u32 %v2061, 16
        %v2064 = vand.u32 %v2060, 65535
        %v2065 = vshrl.u32 %v2060, 16
        %v2066 = vmul.u32 %v2062, %v2064
        %v2067 = vmul.u32 %v2062, %v2065
        %v2068 = vmul.u32 %v2063, %v2064
        %v2069 = vmul.u32 %v2063, %v2065
        %v2070 = vshll.u32 %v2067, 16
        %v2071 = vshrl.u32 %v2067, 16
        %v2072 = vshll.u32 %v2068, 16
        %v2073 = vshrl.u32 %v2068, 16
        %vm2074 = vc.u32 %v2066, %v2070
        %v2075 = vsel %vm2074, 1, 0
        %v2076 = vadd.s32 %v2066, %v2070
        %v2077 = vadd.s32 %v2069, %v2075
        %vm2078 = vc.u32 %v2076, %v2072
        %v2079 = vsel %vm2078, 1, 0
        %v2080 = vadd.s32 %v2076, %v2072
        %v2081 = vadd.s32 %v2077, %v2079
        %v2082 = vadd.s32 %v2081, %v2071
        %v2083 = vadd.s32 %v2082, %v2073
        %v2084 = vand.u32 %v2061, 65535
        %v2085 = vshrl.u32 %v2061, 16
        %v2086 = vand.u32 %v2056, 65535
        %v2087 = vshrl.u32 %v2056, 16
        %v2088 = vmul.u32 %v2084, %v2086
        %v2089 = vmul.u32 %v2084, %v2087
        %v2090 = vmul.u32 %v2085, %v2086
        %v2091 = vmul.u32 %v2085, %v2087
        %v2092 = vshll.u32 %v2089, 16
        %v2093 = vshrl.u32 %v2089, 16
        %v2094 = vshll.u32 %v2090, 16
        %v2095 = vshrl.u32 %v2090, 16
        %vm2096 = vc.u32 %v2088, %v2092
        %v2097 = vsel %vm2096, 1, 0
        %v2098 = vadd.s32 %v2088, %v2092
        %v2099 = vadd.s32 %v2091, %v2097
        %vm2100 = vc.u32 %v2098, %v2094
        %v2101 = vsel %vm2100, 1, 0
        %v2102 = vadd.s32 %v2098, %v2094
        %v2103 = vadd.s32 %v2099, %v2101
        %v2104 = vadd.s32 %v2103, %v2093
        %v2105 = vadd.s32 %v2104, %v2095
        %v2106 = vmul.u32 %v2061, %v2052
        %v2107 = vadd.s32 %v2083, %v2102
        %vm2108 = vc.u32 %v2083, %v2102
        %v2109 = vadd.s32 %v2105, 1
        %v2110 = vsel %vm2108, %v2109, %v2105
        %v2111 = vadd.s32 %v2106, %v2110
        %v2112 = vadd.s32 %v2111, 536870912
        %v2113 = vshrl.u32 %v2112, 30
        %v2114 = vshll.u32 %v2113, 30
        %v2115 = vsub.s32 %v2111, %v2114
        %vm2116 = vcmp.lt.s32.totalorder %v2115, 0
        %v2117 = vsub.s32 0, %v2115
        %v2118 = vsel %vm2116, %v2117, %v2115
        %v2119 = vclz %v2118
        %v2120 = vsub.s32 %v2119, 2
        %vm2121 = vcmp.gt.s32.totalorder 0, %v2120
        %v2122 = vsel %vm2121, 0, %v2120
        %v2123 = vsub.s32 32, %v2122
        %v2124 = vshll.u32 %v2115, %v2122
        %v2125 = vshrl.u32 %v2107, %v2123
        %v2126 = vor.u32 %v2124, %v2125
        %v2127 = vsub.s32 4294967266, %v2122
        %v2128 = vadd.s32 %v2127, 127
        %v2129 = vshll.u32 %v2128, 23
        %v2130 = vor.u32 4788187, %v2129
        %v2131 = vand.u32 2147483647, %v2130
        %v2133 = vcvt.s32.f32 %v2126
        %v2134 = vmul.f32 %v2133, %v2131
        %v2135 = vxor.u32 %v2134, 2147483648
        %v2136 = vsel %vm2015, %v2135, %v2134
        %v2137 = vsub.s32 4, %v2113
        %v2138 = vsel %vm2015, %v2137, %v2113
        %v2139 = vsel %vm2014, %v459, %v2136
        %v2140 = vsel %vm2014, 0, %v2138
        %v2141 = vmul.f32 %v2139, %v2139
        %v2142 = vmul.f32 %v2141, -0.001358992
        %v2143 = vadd.f32 %v2142, 0.041655596
        %v2144 = vmul.f32 %v2141, %v2143
        %v2145 = vadd.f32 %v2144, -0.4999988
        %v2146 = vmul.f32 %v2141, %v2145
        %v2147 = vadd.f32 1.0, %v2146
        %v2148 = vmul.f32 %v2139, %v2139
        %v2149 = vmul.f32 %v2148, -0.00019511016
        %v2150 = vadd.f32 %v2149, 0.008332121
        %v2151 = vmul.f32 %v2148, %v2150
        %v2152 = vadd.f32 %v2151, -0.16666654
        %v2153 = vmul.f32 %v2148, %v2152
        %v2154 = vadd.f32 %v2153, 1.0
        %v2155 = vmul.f32 %v2154, %v2139
        %vm2156 = vweird.f32 %v459
        %v2157 = vand.u32 %v2140, 3
        %vm2158 = vcmp.lt.s32.totalorder %v2157, 2
        %vm2159 = vcmp.eq.s32.totalorder %v2157, 0
        %v2160 = vxor.u32 %v2155, 2147483648
        %v2161 = vsel %vm2159, %v2147, %v2160
        %vm2162 = vcmp.eq.s32.totalorder %v2157, 2
        %v2163 = vxor.u32 %v2147, 2147483648
        %v2164 = vsel %vm2162, %v2163, %v2155
        %v2165 = vsel %vm2158, %v2161, %v2164
        %v2166 = vsel %vm2156, nan, %v2165
        %v2167 = vand.u32 2147483647, %v460
        %vm2168 = vcmp.le.f32.partialorder %v2167, 0.7853982
        %vm2169 = vcmp.lt.s32.totalorder %v460, 0
        %v2170 = vand.u32 %v460, 2139095040
        %v2171 = vshrl.u32 %v2170, 23
        %v2172 = vsub.s32 %v2171, 127
        %v2173 = vand.u32 2147483647, %v460
        %v2174 = vand.u32 %v2173, 8388607
        %v2175 = vor.u32 %v2174, 8388608
        %v2176 = vsub.s32 0, %v2175
        %v2177 = vadd.s32 %v2172, 1
        %vm2178 = vcmp.gt.s32.totalorder %v2177, 0
        %v2179 = vsel %vm2178, %v2177, 0
        %v2180 = vshrl.u32 %v2179, 5
        %v2181 = vand.u32 %v2179, 31
        %v2182 = vsub.s32 32, %v2181
        %v2183 = vshrl.u32 683565275, %v2182
        %v2184 = vshll.u32 683565275, %v2181
        %v2185 = vshrl.u32 2475754826, %v2182
        %v2186 = vor.u32 %v2184, %v2185
        %v2187 = vshll.u32 2475754826, %v2181
        %v2188 = vshrl.u32 2131351028, %v2182
        %v2189 = vor.u32 %v2187, %v2188
        %v2190 = vshll.u32 2131351028, %v2181
        %v2191 = vshrl.u32 2102212464, %v2182
        %v2192 = vor.u32 %v2190, %v2191
        %v2193 = vshll.u32 2102212464, %v2181
        %v2194 = vshrl.u32 920167782, %v2182
        %v2195 = vor.u32 %v2193, %v2194
        %v2196 = vshll.u32 920167782, %v2181
        %v2197 = vshrl.u32 1326507024, %v2182
        %v2198 = vor.u32 %v2196, %v2197
        %vm2199 = vcmp.lt.s32.totalorder %v2180, 1
        %vm2200 = vcmp.lt.s32.totalorder %v2180, 2
        %vm2201 = vcmp.lt.s32.totalorder %v2180, 3
        %vm2202 = vcmp.lt.s32.totalorder %v2180, 4
        %v2203 = vsel %vm2199, %v2183, %v2186
        %v2204 = vsel %vm2202, %v2192, 2102212464
        %v2205 = vsel %vm2201, %v2189, %v2204
        %v2206 = vsel %vm2200, %v2203, %v2205
        %v2207 = vsel %vm2199, %v2186, %v2189
        %v2208 = vsel %vm2202, %v2195, 920167782
        %v2209 = vsel %vm2201, %v2192, %v2208
        %v2210 = vsel %vm2200, %v2207, %v2209
        %v2211 = vsel %vm2199, %v2189, %v2192
        %v2212 = vsel %vm2202, %v2198, 1326507024
        %v2213 = vsel %vm2201, %v2195, %v2212
        %v2214 = vsel %vm2200, %v2211, %v2213
        %v2215 = vshll.u32 %v2175, 8
        %v2216 = vand.u32 %v2215, 65535
        %v2217 = vshrl.u32 %v2215, 16
        %v2218 = vand.u32 %v2214, 65535
        %v2219 = vshrl.u32 %v2214, 16
        %v2220 = vmul.u32 %v2216, %v2218
        %v2221 = vmul.u32 %v2216, %v2219
        %v2222 = vmul.u32 %v2217, %v2218
        %v2223 = vmul.u32 %v2217, %v2219
        %v2224 = vshll.u32 %v2221, 16
        %v2225 = vshrl.u32 %v2221, 16
        %v2226 = vshll.u32 %v2222, 16
        %v2227 = vshrl.u32 %v2222, 16
        %vm2228 = vc.u32 %v2220, %v2224
        %v2229 = vsel %vm2228, 1, 0
        %v2230 = vadd.s32 %v2220, %v2224
        %v2231 = vadd.s32 %v2223, %v2229
        %vm2232 = vc.u32 %v2230, %v2226
        %v2233 = vsel %vm2232, 1, 0
        %v2234 = vadd.s32 %v2230, %v2226
        %v2235 = vadd.s32 %v2231, %v2233
        %v2236 = vadd.s32 %v2235, %v2225
        %v2237 = vadd.s32 %v2236, %v2227
        %v2238 = vand.u32 %v2215, 65535
        %v2239 = vshrl.u32 %v2215, 16
        %v2240 = vand.u32 %v2210, 65535
        %v2241 = vshrl.u32 %v2210, 16
        %v2242 = vmul.u32 %v2238, %v2240
        %v2243 = vmul.u32 %v2238, %v2241
        %v2244 = vmul.u32 %v2239, %v2240
        %v2245 = vmul.u32 %v2239, %v2241
        %v2246 = vshll.u32 %v2243, 16
        %v2247 = vshrl.u32 %v2243, 16
        %v2248 = vshll.u32 %v2244, 16
        %v2249 = vshrl.u32 %v2244, 16
        %vm2250 = vc.u32 %v2242, %v2246
        %v2251 = vsel %vm2250, 1, 0
        %v2252 = vadd.s32 %v2242, %v2246
        %v2253 = vadd.s32 %v2245, %v2251
        %vm2254 = vc.u32 %v2252, %v2248
        %v2255 = vsel %vm2254, 1, 0
        %v2256 = vadd.s32 %v2252, %v2248
        %v2257 = vadd.s32 %v2253, %v2255
        %v2258 = vadd.s32 %v2257, %v2247
        %v2259 = vadd.s32 %v2258, %v2249
        %v2260 = vmul.u32 %v2215, %v2206
        %v2261 = vadd.s32 %v2237, %v2256
        %vm2262 = vc.u32 %v2237, %v2256
        %v2263 = vadd.s32 %v2259, 1
        %v2264 = vsel %vm2262, %v2263, %v2259
        %v2265 = vadd.s32 %v2260, %v2264
        %v2266 = vadd.s32 %v2265, 536870912
        %v2267 = vshrl.u32 %v2266, 30
        %v2268 = vshll.u32 %v2267, 30
        %v2269 = vsub.s32 %v2265, %v2268
        %vm2270 = vcmp.lt.s32.totalorder %v2269, 0
        %v2271 = vsub.s32 0, %v2269
        %v2272 = vsel %vm2270, %v2271, %v2269
        %v2273 = vclz %v2272
        %v2274 = vsub.s32 %v2273, 2
        %vm2275 = vcmp.gt.s32.totalorder 0, %v2274
        %v2276 = vsel %vm2275, 0, %v2274
        %v2277 = vsub.s32 32, %v2276
        %v2278 = vshll.u32 %v2269, %v2276
        %v2279 = vshrl.u32 %v2261, %v2277
        %v2280 = vor.u32 %v2278, %v2279
        %v2281 = vsub.s32 4294967266, %v2276
        %v2282 = vadd.s32 %v2281, 127
        %v2283 = vshll.u32 %v2282, 23
        %v2284 = vor.u32 4788187, %v2283
        %v2285 = vand.u32 2147483647, %v2284
        %v2287 = vcvt.s32.f32 %v2280
        %v2288 = vmul.f32 %v2287, %v2285
        %v2289 = vxor.u32 %v2288, 2147483648
        %v2290 = vsel %vm2169, %v2289, %v2288
        %v2291 = vsub.s32 4, %v2267
        %v2292 = vsel %vm2169, %v2291, %v2267
        %v2293 = vsel %vm2168, %v460, %v2290
        %v2294 = vsel %vm2168, 0, %v2292
        %v2295 = vmul.f32 %v2293, %v2293
        %v2296 = vmul.f32 %v2295, -0.001358992
        %v2297 = vadd.f32 %v2296, 0.041655596
        %v2298 = vmul.f32 %v2295, %v2297
        %v2299 = vadd.f32 %v2298, -0.4999988
        %v2300 = vmul.f32 %v2295, %v2299
        %v2301 = vadd.f32 1.0, %v2300
        %v2302 = vmul.f32 %v2293, %v2293
        %v2303 = vmul.f32 %v2302, -0.00019511016
        %v2304 = vadd.f32 %v2303, 0.008332121
        %v2305 = vmul.f32 %v2302, %v2304
        %v2306 = vadd.f32 %v2305, -0.16666654
        %v2307 = vmul.f32 %v2302, %v2306
        %v2308 = vadd.f32 %v2307, 1.0
        %v2309 = vmul.f32 %v2308, %v2293
        %vm2310 = vweird.f32 %v460
        %v2311 = vand.u32 %v2294, 3
        %vm2312 = vcmp.lt.s32.totalorder %v2311, 2
        %vm2313 = vcmp.eq.s32.totalorder %v2311, 0
        %v2314 = vxor.u32 %v2309, 2147483648
        %v2315 = vsel %vm2313, %v2301, %v2314
        %vm2316 = vcmp.eq.s32.totalorder %v2311, 2
        %v2317 = vxor.u32 %v2301, 2147483648
        %v2318 = vsel %vm2316, %v2317, %v2309
        %v2319 = vsel %vm2312, %v2315, %v2318
        %v2320 = vsel %vm2310, nan, %v2319
        %v2321 = vand.u32 2147483647, %v461
        %vm2322 = vcmp.le.f32.partialorder %v2321, 0.7853982
        %vm2323 = vcmp.lt.s32.totalorder %v461, 0
        %v2324 = vand.u32 %v461, 2139095040
        %v2325 = vshrl.u32 %v2324, 23
        %v2326 = vsub.s32 %v2325, 127
        %v2327 = vand.u32 2147483647, %v461
        %v2328 = vand.u32 %v2327, 8388607
        %v2329 = vor.u32 %v2328, 8388608
        %v2330 = vsub.s32 0, %v2329
        %v2331 = vadd.s32 %v2326, 1
        %vm2332 = vcmp.gt.s32.totalorder %v2331, 0
        %v2333 = vsel %vm2332, %v2331, 0
        %v2334 = vshrl.u32 %v2333, 5
        %v2335 = vand.u32 %v2333, 31
        %v2336 = vsub.s32 32, %v2335
        %v2337 = vshrl.u32 683565275, %v2336
        %v2338 = vshll.u32 683565275, %v2335
        %v2339 = vshrl.u32 2475754826, %v2336
        %v2340 = vor.u32 %v2338, %v2339
        %v2341 = vshll.u32 2475754826, %v2335
        %v2342 = vshrl.u32 2131351028, %v2336
        %v2343 = vor.u32 %v2341, %v2342
        %v2344 = vshll.u32 2131351028, %v2335
        %v2345 = vshrl.u32 2102212464, %v2336
        %v2346 = vor.u32 %v2344, %v2345
        %v2347 = vshll.u32 2102212464, %v2335
        %v2348 = vshrl.u32 920167782, %v2336
        %v2349 = vor.u32 %v2347, %v2348
        %v2350 = vshll.u32 920167782, %v2335
        %v2351 = vshrl.u32 1326507024, %v2336
        %v2352 = vor.u32 %v2350, %v2351
        %vm2353 = vcmp.lt.s32.totalorder %v2334, 1
        %vm2354 = vcmp.lt.s32.totalorder %v2334, 2
        %vm2355 = vcmp.lt.s32.totalorder %v2334, 3
        %vm2356 = vcmp.lt.s32.totalorder %v2334, 4
        %v2357 = vsel %vm2353, %v2337, %v2340
        %v2358 = vsel %vm2356, %v2346, 2102212464
        %v2359 = vsel %vm2355, %v2343, %v2358
        %v2360 = vsel %vm2354, %v2357, %v2359
        %v2361 = vsel %vm2353, %v2340, %v2343
        %v2362 = vsel %vm2356, %v2349, 920167782
        %v2363 = vsel %vm2355, %v2346, %v2362
        %v2364 = vsel %vm2354, %v2361, %v2363
        %v2365 = vsel %vm2353, %v2343, %v2346
        %v2366 = vsel %vm2356, %v2352, 1326507024
        %v2367 = vsel %vm2355, %v2349, %v2366
        %v2368 = vsel %vm2354, %v2365, %v2367
        %v2369 = vshll.u32 %v2329, 8
        %v2370 = vand.u32 %v2369, 65535
        %v2371 = vshrl.u32 %v2369, 16
        %v2372 = vand.u32 %v2368, 65535
        %v2373 = vshrl.u32 %v2368, 16
        %v2374 = vmul.u32 %v2370, %v2372
        %v2375 = vmul.u32 %v2370, %v2373
        %v2376 = vmul.u32 %v2371, %v2372
        %v2377 = vmul.u32 %v2371, %v2373
        %v2378 = vshll.u32 %v2375, 16
        %v2379 = vshrl.u32 %v2375, 16
        %v2380 = vshll.u32 %v2376, 16
        %v2381 = vshrl.u32 %v2376, 16
        %vm2382 = vc.u32 %v2374, %v2378
        %v2383 = vsel %vm2382, 1, 0
        %v2384 = vadd.s32 %v2374, %v2378
        %v2385 = vadd.s32 %v2377, %v2383
        %vm2386 = vc.u32 %v2384, %v2380
        %v2387 = vsel %vm2386, 1, 0
        %v2388 = vadd.s32 %v2384, %v2380
        %v2389 = vadd.s32 %v2385, %v2387
        %v2390 = vadd.s32 %v2389, %v2379
        %v2391 = vadd.s32 %v2390, %v2381
        %v2392 = vand.u32 %v2369, 65535
        %v2393 = vshrl.u32 %v2369, 16
        %v2394 = vand.u32 %v2364, 65535
        %v2395 = vshrl.u32 %v2364, 16
        %v2396 = vmul.u32 %v2392, %v2394
        %v2397 = vmul.u32 %v2392, %v2395
        %v2398 = vmul.u32 %v2393, %v2394
        %v2399 = vmul.u32 %v2393, %v2395
        %v2400 = vshll.u32 %v2397, 16
        %v2401 = vshrl.u32 %v2397, 16
        %v2402 = vshll.u32 %v2398, 16
        %v2403 = vshrl.u32 %v2398, 16
        %vm2404 = vc.u32 %v2396, %v2400
        %v2405 = vsel %vm2404, 1, 0
        %v2406 = vadd.s32 %v2396, %v2400
        %v2407 = vadd.s32 %v2399, %v2405
        %vm2408 = vc.u32 %v2406, %v2402
        %v2409 = vsel %vm2408, 1, 0
        %v2410 = vadd.s32 %v2406, %v2402
        %v2411 = vadd.s32 %v2407, %v2409
        %v2412 = vadd.s32 %v2411, %v2401
        %v2413 = vadd.s32 %v2412, %v2403
        %v2414 = vmul.u32 %v2369, %v2360
        %v2415 = vadd.s32 %v2391, %v2410
        %vm2416 = vc.u32 %v2391, %v2410
        %v2417 = vadd.s32 %v2413, 1
        %v2418 = vsel %vm2416, %v2417, %v2413
        %v2419 = vadd.s32 %v2414, %v2418
        %v2420 = vadd.s32 %v2419, 536870912
        %v2421 = vshrl.u32 %v2420, 30
        %v2422 = vshll.u32 %v2421, 30
        %v2423 = vsub.s32 %v2419, %v2422
        %vm2424 = vcmp.lt.s32.totalorder %v2423, 0
        %v2425 = vsub.s32 0, %v2423
        %v2426 = vsel %vm2424, %v2425, %v2423
        %v2427 = vclz %v2426
        %v2428 = vsub.s32 %v2427, 2
        %vm2429 = vcmp.gt.s32.totalorder 0, %v2428
        %v2430 = vsel %vm2429, 0, %v2428
        %v2431 = vsub.s32 32, %v2430
        %v2432 = vshll.u32 %v2423, %v2430
        %v2433 = vshrl.u32 %v2415, %v2431
        %v2434 = vor.u32 %v2432, %v2433
        %v2435 = vsub.s32 4294967266, %v2430
        %v2436 = vadd.s32 %v2435, 127
        %v2437 = vshll.u32 %v2436, 23
        %v2438 = vor.u32 4788187, %v2437
        %v2439 = vand.u32 2147483647, %v2438
        %v2441 = vcvt.s32.f32 %v2434
        %v2442 = vmul.f32 %v2441, %v2439
        %v2443 = vxor.u32 %v2442, 2147483648
        %v2444 = vsel %vm2323, %v2443, %v2442
        %v2445 = vsub.s32 4, %v2421
        %v2446 = vsel %vm2323, %v2445, %v2421
        %v2447 = vsel %vm2322, %v461, %v2444
        %v2448 = vsel %vm2322, 0, %v2446
        %v2449 = vmul.f32 %v2447, %v2447
        %v2450 = vmul.f32 %v2449, -0.001358992
        %v2451 = vadd.f32 %v2450, 0.041655596
        %v2452 = vmul.f32 %v2449, %v2451
        %v2453 = vadd.f32 %v2452, -0.4999988
        %v2454 = vmul.f32 %v2449, %v2453
        %v2455 = vadd.f32 1.0, %v2454
        %v2456 = vmul.f32 %v2447, %v2447
        %v2457 = vmul.f32 %v2456, -0.00019511016
        %v2458 = vadd.f32 %v2457, 0.008332121
        %v2459 = vmul.f32 %v2456, %v2458
        %v2460 = vadd.f32 %v2459, -0.16666654
        %v2461 = vmul.f32 %v2456, %v2460
        %v2462 = vadd.f32 %v2461, 1.0
        %v2463 = vmul.f32 %v2462, %v2447
        %vm2464 = vweird.f32 %v461
        %v2465 = vand.u32 %v2448, 3
        %vm2466 = vcmp.lt.s32.totalorder %v2465, 2
        %vm2467 = vcmp.eq.s32.totalorder %v2465, 0
        %v2468 = vxor.u32 %v2463, 2147483648
        %v2469 = vsel %vm2467, %v2455, %v2468
        %vm2470 = vcmp.eq.s32.totalorder %v2465, 2
        %v2471 = vxor.u32 %v2455, 2147483648
        %v2472 = vsel %vm2470, %v2471, %v2463
        %v2473 = vsel %vm2466, %v2469, %v2472
        %v2474 = vsel %vm2464, nan, %v2473
        %v2475 = vand.u32 2147483647, %v462
        %vm2476 = vcmp.le.f32.partialorder %v2475, 0.7853982
        %vm2477 = vcmp.lt.s32.totalorder %v462, 0
        %v2478 = vand.u32 %v462, 2139095040
        %v2479 = vshrl.u32 %v2478, 23
        %v2480 = vsub.s32 %v2479, 127
        %v2481 = vand.u32 2147483647, %v462
        %v2482 = vand.u32 %v2481, 8388607
        %v2483 = vor.u32 %v2482, 8388608
        %v2484 = vsub.s32 0, %v2483
        %v2485 = vadd.s32 %v2480, 1
        %vm2486 = vcmp.gt.s32.totalorder %v2485, 0
        %v2487 = vsel %vm2486, %v2485, 0
        %v2488 = vshrl.u32 %v2487, 5
        %v2489 = vand.u32 %v2487, 31
        %v2490 = vsub.s32 32, %v2489
        %v2491 = vshrl.u32 683565275, %v2490
        %v2492 = vshll.u32 683565275, %v2489
        %v2493 = vshrl.u32 2475754826, %v2490
        %v2494 = vor.u32 %v2492, %v2493
        %v2495 = vshll.u32 2475754826, %v2489
        %v2496 = vshrl.u32 2131351028, %v2490
        %v2497 = vor.u32 %v2495, %v2496
        %v2498 = vshll.u32 2131351028, %v2489
        %v2499 = vshrl.u32 2102212464, %v2490
        %v2500 = vor.u32 %v2498, %v2499
        %v2501 = vshll.u32 2102212464, %v2489
        %v2502 = vshrl.u32 920167782, %v2490
        %v2503 = vor.u32 %v2501, %v2502
        %v2504 = vshll.u32 920167782, %v2489
        %v2505 = vshrl.u32 1326507024, %v2490
        %v2506 = vor.u32 %v2504, %v2505
        %vm2507 = vcmp.lt.s32.totalorder %v2488, 1
        %vm2508 = vcmp.lt.s32.totalorder %v2488, 2
        %vm2509 = vcmp.lt.s32.totalorder %v2488, 3
        %vm2510 = vcmp.lt.s32.totalorder %v2488, 4
        %v2511 = vsel %vm2507, %v2491, %v2494
        %v2512 = vsel %vm2510, %v2500, 2102212464
        %v2513 = vsel %vm2509, %v2497, %v2512
        %v2514 = vsel %vm2508, %v2511, %v2513
        %v2515 = vsel %vm2507, %v2494, %v2497
        %v2516 = vsel %vm2510, %v2503, 920167782
        %v2517 = vsel %vm2509, %v2500, %v2516
        %v2518 = vsel %vm2508, %v2515, %v2517
        %v2519 = vsel %vm2507, %v2497, %v2500
        %v2520 = vsel %vm2510, %v2506, 1326507024
        %v2521 = vsel %vm2509, %v2503, %v2520
        %v2522 = vsel %vm2508, %v2519, %v2521
        %v2523 = vshll.u32 %v2483, 8
        %v2524 = vand.u32 %v2523, 65535
        %v2525 = vshrl.u32 %v2523, 16
        %v2526 = vand.u32 %v2522, 65535
        %v2527 = vshrl.u32 %v2522, 16
        %v2528 = vmul.u32 %v2524, %v2526
        %v2529 = vmul.u32 %v2524, %v2527
        %v2530 = vmul.u32 %v2525, %v2526
        %v2531 = vmul.u32 %v2525, %v2527
        %v2532 = vshll.u32 %v2529, 16
        %v2533 = vshrl.u32 %v2529, 16
        %v2534 = vshll.u32 %v2530, 16
        %v2535 = vshrl.u32 %v2530, 16
        %vm2536 = vc.u32 %v2528, %v2532
        %v2537 = vsel %vm2536, 1, 0
        %v2538 = vadd.s32 %v2528, %v2532
        %v2539 = vadd.s32 %v2531, %v2537
        %vm2540 = vc.u32 %v2538, %v2534
        %v2541 = vsel %vm2540, 1, 0
        %v2542 = vadd.s32 %v2538, %v2534
        %v2543 = vadd.s32 %v2539, %v2541
        %v2544 = vadd.s32 %v2543, %v2533
        %v2545 = vadd.s32 %v2544, %v2535
        %v2546 = vand.u32 %v2523, 65535
        %v2547 = vshrl.u32 %v2523, 16
        %v2548 = vand.u32 %v2518, 65535
        %v2549 = vshrl.u32 %v2518, 16
        %v2550 = vmul.u32 %v2546, %v2548
        %v2551 = vmul.u32 %v2546, %v2549
        %v2552 = vmul.u32 %v2547, %v2548
        %v2553 = vmul.u32 %v2547, %v2549
        %v2554 = vshll.u32 %v2551, 16
        %v2555 = vshrl.u32 %v2551, 16
        %v2556 = vshll.u32 %v2552, 16
        %v2557 = vshrl.u32 %v2552, 16
        %vm2558 = vc.u32 %v2550, %v2554
        %v2559 = vsel %vm2558, 1, 0
        %v2560 = vadd.s32 %v2550, %v2554
        %v2561 = vadd.s32 %v2553, %v2559
        %vm2562 = vc.u32 %v2560, %v2556
        %v2563 = vsel %vm2562, 1, 0
        %v2564 = vadd.s32 %v2560, %v2556
        %v2565 = vadd.s32 %v2561, %v2563
        %v2566 = vadd.s32 %v2565, %v2555
        %v2567 = vadd.s32 %v2566, %v2557
        %v2568 = vmul.u32 %v2523, %v2514
        %v2569 = vadd.s32 %v2545, %v2564
        %vm2570 = vc.u32 %v2545, %v2564
        %v2571 = vadd.s32 %v2567, 1
        %v2572 = vsel %vm2570, %v2571, %v2567
        %v2573 = vadd.s32 %v2568, %v2572
        %v2574 = vadd.s32 %v2573, 536870912
        %v2575 = vshrl.u32 %v2574, 30
        %v2576 = vshll.u32 %v2575, 30
        %v2577 = vsub.s32 %v2573, %v2576
        %vm2578 = vcmp.lt.s32.totalorder %v2577, 0
        %v2579 = vsub.s32 0, %v2577
        %v2580 = vsel %vm2578, %v2579, %v2577
        %v2581 = vclz %v2580
        %v2582 = vsub.s32 %v2581, 2
        %vm2583 = vcmp.gt.s32.totalorder 0, %v2582
        %v2584 = vsel %vm2583, 0, %v2582
        %v2585 = vsub.s32 32, %v2584
        %v2586 = vshll.u32 %v2577, %v2584
        %v2587 = vshrl.u32 %v2569, %v2585
        %v2588 = vor.u32 %v2586, %v2587
        %v2589 = vsub.s32 4294967266, %v2584
        %v2590 = vadd.s32 %v2589, 127
        %v2591 = vshll.u32 %v2590, 23
        %v2592 = vor.u32 4788187, %v2591
        %v2593 = vand.u32 2147483647, %v2592
        %v2595 = vcvt.s32.f32 %v2588
        %v2596 = vmul.f32 %v2595, %v2593
        %v2597 = vxor.u32 %v2596, 2147483648
        %v2598 = vsel %vm2477, %v2597, %v2596
        %v2599 = vsub.s32 4, %v2575
        %v2600 = vsel %vm2477, %v2599, %v2575
        %v2601 = vsel %vm2476, %v462, %v2598
        %v2602 = vsel %vm2476, 0, %v2600
        %v2603 = vmul.f32 %v2601, %v2601
        %v2604 = vmul.f32 %v2603, -0.001358992
        %v2605 = vadd.f32 %v2604, 0.041655596
        %v2606 = vmul.f32 %v2603, %v2605
        %v2607 = vadd.f32 %v2606, -0.4999988
        %v2608 = vmul.f32 %v2603, %v2607
        %v2609 = vadd.f32 1.0, %v2608
        %v2610 = vmul.f32 %v2601, %v2601
        %v2611 = vmul.f32 %v2610, -0.00019511016
        %v2612 = vadd.f32 %v2611, 0.008332121
        %v2613 = vmul.f32 %v2610, %v2612
        %v2614 = vadd.f32 %v2613, -0.16666654
        %v2615 = vmul.f32 %v2610, %v2614
        %v2616 = vadd.f32 %v2615, 1.0
        %v2617 = vmul.f32 %v2616, %v2601
        %vm2618 = vweird.f32 %v462
        %v2619 = vand.u32 %v2602, 3
        %vm2620 = vcmp.lt.s32.totalorder %v2619, 2
        %vm2621 = vcmp.eq.s32.totalorder %v2619, 0
        %v2622 = vxor.u32 %v2617, 2147483648
        %v2623 = vsel %vm2621, %v2609, %v2622
        %vm2624 = vcmp.eq.s32.totalorder %v2619, 2
        %v2625 = vxor.u32 %v2609, 2147483648
        %v2626 = vsel %vm2624, %v2625, %v2617
        %v2627 = vsel %vm2620, %v2623, %v2626
        %v2628 = vsel %vm2618, nan, %v2627
        %v2629 = vand.u32 2147483647, %v463
        %vm2630 = vcmp.le.f32.partialorder %v2629, 0.7853982
        %vm2631 = vcmp.lt.s32.totalorder %v463, 0
        %v2632 = vand.u32 %v463, 2139095040
        %v2633 = vshrl.u32 %v2632, 23
        %v2634 = vsub.s32 %v2633, 127
        %v2635 = vand.u32 2147483647, %v463
        %v2636 = vand.u32 %v2635, 8388607
        %v2637 = vor.u32 %v2636, 8388608
        %v2638 = vsub.s32 0, %v2637
        %v2639 = vadd.s32 %v2634, 1
        %vm2640 = vcmp.gt.s32.totalorder %v2639, 0
        %v2641 = vsel %vm2640, %v2639, 0
        %v2642 = vshrl.u32 %v2641, 5
        %v2643 = vand.u32 %v2641, 31
        %v2644 = vsub.s32 32, %v2643
        %v2645 = vshrl.u32 683565275, %v2644
        %v2646 = vshll.u32 683565275, %v2643
        %v2647 = vshrl.u32 2475754826, %v2644
        %v2648 = vor.u32 %v2646, %v2647
        %v2649 = vshll.u32 2475754826, %v2643
        %v2650 = vshrl.u32 2131351028, %v2644
        %v2651 = vor.u32 %v2649, %v2650
        %v2652 = vshll.u32 2131351028, %v2643
        %v2653 = vshrl.u32 2102212464, %v2644
        %v2654 = vor.u32 %v2652, %v2653
        %v2655 = vshll.u32 2102212464, %v2643
        %v2656 = vshrl.u32 920167782, %v2644
        %v2657 = vor.u32 %v2655, %v2656
        %v2658 = vshll.u32 920167782, %v2643
        %v2659 = vshrl.u32 1326507024, %v2644
        %v2660 = vor.u32 %v2658, %v2659
        %vm2661 = vcmp.lt.s32.totalorder %v2642, 1
        %vm2662 = vcmp.lt.s32.totalorder %v2642, 2
        %vm2663 = vcmp.lt.s32.totalorder %v2642, 3
        %vm2664 = vcmp.lt.s32.totalorder %v2642, 4
        %v2665 = vsel %vm2661, %v2645, %v2648
        %v2666 = vsel %vm2664, %v2654, 2102212464
        %v2667 = vsel %vm2663, %v2651, %v2666
        %v2668 = vsel %vm2662, %v2665, %v2667
        %v2669 = vsel %vm2661, %v2648, %v2651
        %v2670 = vsel %vm2664, %v2657, 920167782
        %v2671 = vsel %vm2663, %v2654, %v2670
        %v2672 = vsel %vm2662, %v2669, %v2671
        %v2673 = vsel %vm2661, %v2651, %v2654
        %v2674 = vsel %vm2664, %v2660, 1326507024
        %v2675 = vsel %vm2663, %v2657, %v2674
        %v2676 = vsel %vm2662, %v2673, %v2675
        %v2677 = vshll.u32 %v2637, 8
        %v2678 = vand.u32 %v2677, 65535
        %v2679 = vshrl.u32 %v2677, 16
        %v2680 = vand.u32 %v2676, 65535
        %v2681 = vshrl.u32 %v2676, 16
        %v2682 = vmul.u32 %v2678, %v2680
        %v2683 = vmul.u32 %v2678, %v2681
        %v2684 = vmul.u32 %v2679, %v2680
        %v2685 = vmul.u32 %v2679, %v2681
        %v2686 = vshll.u32 %v2683, 16
        %v2687 = vshrl.u32 %v2683, 16
        %v2688 = vshll.u32 %v2684, 16
        %v2689 = vshrl.u32 %v2684, 16
        %vm2690 = vc.u32 %v2682, %v2686
        %v2691 = vsel %vm2690, 1, 0
        %v2692 = vadd.s32 %v2682, %v2686
        %v2693 = vadd.s32 %v2685, %v2691
        %vm2694 = vc.u32 %v2692, %v2688
        %v2695 = vsel %vm2694, 1, 0
        %v2696 = vadd.s32 %v2692, %v2688
        %v2697 = vadd.s32 %v2693, %v2695
        %v2698 = vadd.s32 %v2697, %v2687
        %v2699 = vadd.s32 %v2698, %v2689
        %v2700 = vand.u32 %v2677, 65535
        %v2701 = vshrl.u32 %v2677, 16
        %v2702 = vand.u32 %v2672, 65535
        %v2703 = vshrl.u32 %v2672, 16
        %v2704 = vmul.u32 %v2700, %v2702
        %v2705 = vmul.u32 %v2700, %v2703
        %v2706 = vmul.u32 %v2701, %v2702
        %v2707 = vmul.u32 %v2701, %v2703
        %v2708 = vshll.u32 %v2705, 16
        %v2709 = vshrl.u32 %v2705, 16
        %v2710 = vshll.u32 %v2706, 16
        %v2711 = vshrl.u32 %v2706, 16
        %vm2712 = vc.u32 %v2704, %v2708
        %v2713 = vsel %vm2712, 1, 0
        %v2714 = vadd.s32 %v2704, %v2708
        %v2715 = vadd.s32 %v2707, %v2713
        %vm2716 = vc.u32 %v2714, %v2710
        %v2717 = vsel %vm2716, 1, 0
        %v2718 = vadd.s32 %v2714, %v2710
        %v2719 = vadd.s32 %v2715, %v2717
        %v2720 = vadd.s32 %v2719, %v2709
        %v2721 = vadd.s32 %v2720, %v2711
        %v2722 = vmul.u32 %v2677, %v2668
        %v2723 = vadd.s32 %v2699, %v2718
        %vm2724 = vc.u32 %v2699, %v2718
        %v2725 = vadd.s32 %v2721, 1
        %v2726 = vsel %vm2724, %v2725, %v2721
        %v2727 = vadd.s32 %v2722, %v2726
        %v2728 = vadd.s32 %v2727, 536870912
        %v2729 = vshrl.u32 %v2728, 30
        %v2730 = vshll.u32 %v2729, 30
        %v2731 = vsub.s32 %v2727, %v2730
        %vm2732 = vcmp.lt.s32.totalorder %v2731, 0
        %v2733 = vsub.s32 0, %v2731
        %v2734 = vsel %vm2732, %v2733, %v2731
        %v2735 = vclz %v2734
        %v2736 = vsub.s32 %v2735, 2
        %vm2737 = vcmp.gt.s32.totalorder 0, %v2736
        %v2738 = vsel %vm2737, 0, %v2736
        %v2739 = vsub.s32 32, %v2738
        %v2740 = vshll.u32 %v2731, %v2738
        %v2741 = vshrl.u32 %v2723, %v2739
        %v2742 = vor.u32 %v2740, %v2741
        %v2743 = vsub.s32 4294967266, %v2738
        %v2744 = vadd.s32 %v2743, 127
        %v2745 = vshll.u32 %v2744, 23
        %v2746 = vor.u32 4788187, %v2745
        %v2747 = vand.u32 2147483647, %v2746
        %v2749 = vcvt.s32.f32 %v2742
        %v2750 = vmul.f32 %v2749, %v2747
        %v2751 = vxor.u32 %v2750, 2147483648
        %v2752 = vsel %vm2631, %v2751, %v2750
        %v2753 = vsub.s32 4, %v2729
        %v2754 = vsel %vm2631, %v2753, %v2729
        %v2755 = vsel %vm2630, %v463, %v2752
        %v2756 = vsel %vm2630, 0, %v2754
        %v2757 = vmul.f32 %v2755, %v2755
        %v2758 = vmul.f32 %v2757, -0.001358992
        %v2759 = vadd.f32 %v2758, 0.041655596
        %v2760 = vmul.f32 %v2757, %v2759
        %v2761 = vadd.f32 %v2760, -0.4999988
        %v2762 = vmul.f32 %v2757, %v2761
        %v2763 = vadd.f32 1.0, %v2762
        %v2764 = vmul.f32 %v2755, %v2755
        %v2765 = vmul.f32 %v2764, -0.00019511016
        %v2766 = vadd.f32 %v2765, 0.008332121
        %v2767 = vmul.f32 %v2764, %v2766
        %v2768 = vadd.f32 %v2767, -0.16666654
        %v2769 = vmul.f32 %v2764, %v2768
        %v2770 = vadd.f32 %v2769, 1.0
        %v2771 = vmul.f32 %v2770, %v2755
        %vm2772 = vweird.f32 %v463
        %v2773 = vand.u32 %v2756, 3
        %vm2774 = vcmp.lt.s32.totalorder %v2773, 2
        %vm2775 = vcmp.eq.s32.totalorder %v2773, 0
        %v2776 = vxor.u32 %v2771, 2147483648
        %v2777 = vsel %vm2775, %v2763, %v2776
        %vm2778 = vcmp.eq.s32.totalorder %v2773, 2
        %v2779 = vxor.u32 %v2763, 2147483648
        %v2780 = vsel %vm2778, %v2779, %v2771
        %v2781 = vsel %vm2774, %v2777, %v2780
        %v2782 = vsel %vm2772, nan, %v2781
        %v2783 = vand.u32 2147483647, %v464
        %vm2784 = vcmp.le.f32.partialorder %v2783, 0.7853982
        %vm2785 = vcmp.lt.s32.totalorder %v464, 0
        %v2786 = vand.u32 %v464, 2139095040
        %v2787 = vshrl.u32 %v2786, 23
        %v2788 = vsub.s32 %v2787, 127
        %v2789 = vand.u32 2147483647, %v464
        %v2790 = vand.u32 %v2789, 8388607
        %v2791 = vor.u32 %v2790, 8388608
        %v2792 = vsub.s32 0, %v2791
        %v2793 = vadd.s32 %v2788, 1
        %vm2794 = vcmp.gt.s32.totalorder %v2793, 0
        %v2795 = vsel %vm2794, %v2793, 0
        %v2796 = vshrl.u32 %v2795, 5
        %v2797 = vand.u32 %v2795, 31
        %v2798 = vsub.s32 32, %v2797
        %v2799 = vshrl.u32 683565275, %v2798
        %v2800 = vshll.u32 683565275, %v2797
        %v2801 = vshrl.u32 2475754826, %v2798
        %v2802 = vor.u32 %v2800, %v2801
        %v2803 = vshll.u32 2475754826, %v2797
        %v2804 = vshrl.u32 2131351028, %v2798
        %v2805 = vor.u32 %v2803, %v2804
        %v2806 = vshll.u32 2131351028, %v2797
        %v2807 = vshrl.u32 2102212464, %v2798
        %v2808 = vor.u32 %v2806, %v2807
        %v2809 = vshll.u32 2102212464, %v2797
        %v2810 = vshrl.u32 920167782, %v2798
        %v2811 = vor.u32 %v2809, %v2810
        %v2812 = vshll.u32 920167782, %v2797
        %v2813 = vshrl.u32 1326507024, %v2798
        %v2814 = vor.u32 %v2812, %v2813
        %vm2815 = vcmp.lt.s32.totalorder %v2796, 1
        %vm2816 = vcmp.lt.s32.totalorder %v2796, 2
        %vm2817 = vcmp.lt.s32.totalorder %v2796, 3
        %vm2818 = vcmp.lt.s32.totalorder %v2796, 4
        %v2819 = vsel %vm2815, %v2799, %v2802
        %v2820 = vsel %vm2818, %v2808, 2102212464
        %v2821 = vsel %vm2817, %v2805, %v2820
        %v2822 = vsel %vm2816, %v2819, %v2821
        %v2823 = vsel %vm2815, %v2802, %v2805
        %v2824 = vsel %vm2818, %v2811, 920167782
        %v2825 = vsel %vm2817, %v2808, %v2824
        %v2826 = vsel %vm2816, %v2823, %v2825
        %v2827 = vsel %vm2815, %v2805, %v2808
        %v2828 = vsel %vm2818, %v2814, 1326507024
        %v2829 = vsel %vm2817, %v2811, %v2828
        %v2830 = vsel %vm2816, %v2827, %v2829
        %v2831 = vshll.u32 %v2791, 8
        %v2832 = vand.u32 %v2831, 65535
        %v2833 = vshrl.u32 %v2831, 16
        %v2834 = vand.u32 %v2830, 65535
        %v2835 = vshrl.u32 %v2830, 16
        %v2836 = vmul.u32 %v2832, %v2834
        %v2837 = vmul.u32 %v2832, %v2835
        %v2838 = vmul.u32 %v2833, %v2834
        %v2839 = vmul.u32 %v2833, %v2835
        %v2840 = vshll.u32 %v2837, 16
        %v2841 = vshrl.u32 %v2837, 16
        %v2842 = vshll.u32 %v2838, 16
        %v2843 = vshrl.u32 %v2838, 16
        %vm2844 = vc.u32 %v2836, %v2840
        %v2845 = vsel %vm2844, 1, 0
        %v2846 = vadd.s32 %v2836, %v2840
        %v2847 = vadd.s32 %v2839, %v2845
        %vm2848 = vc.u32 %v2846, %v2842
        %v2849 = vsel %vm2848, 1, 0
        %v2850 = vadd.s32 %v2846, %v2842
        %v2851 = vadd.s32 %v2847, %v2849
        %v2852 = vadd.s32 %v2851, %v2841
        %v2853 = vadd.s32 %v2852, %v2843
        %v2854 = vand.u32 %v2831, 65535
        %v2855 = vshrl.u32 %v2831, 16
        %v2856 = vand.u32 %v2826, 65535
        %v2857 = vshrl.u32 %v2826, 16
        %v2858 = vmul.u32 %v2854, %v2856
        %v2859 = vmul.u32 %v2854, %v2857
        %v2860 = vmul.u32 %v2855, %v2856
        %v2861 = vmul.u32 %v2855, %v2857
        %v2862 = vshll.u32 %v2859, 16
        %v2863 = vshrl.u32 %v2859, 16
        %v2864 = vshll.u32 %v2860, 16
        %v2865 = vshrl.u32 %v2860, 16
        %vm2866 = vc.u32 %v2858, %v2862
        %v2867 = vsel %vm2866, 1, 0
        %v2868 = vadd.s32 %v2858, %v2862
        %v2869 = vadd.s32 %v2861, %v2867
        %vm2870 = vc.u32 %v2868, %v2864
        %v2871 = vsel %vm2870, 1, 0
        %v2872 = vadd.s32 %v2868, %v2864
        %v2873 = vadd.s32 %v2869, %v2871
        %v2874 = vadd.s32 %v2873, %v2863
        %v2875 = vadd.s32 %v2874, %v2865
        %v2876 = vmul.u32 %v2831, %v2822
        %v2877 = vadd.s32 %v2853, %v2872
        %vm2878 = vc.u32 %v2853, %v2872
        %v2879 = vadd.s32 %v2875, 1
        %v2880 = vsel %vm2878, %v2879, %v2875
        %v2881 = vadd.s32 %v2876, %v2880
        %v2882 = vadd.s32 %v2881, 536870912
        %v2883 = vshrl.u32 %v2882, 30
        %v2884 = vshll.u32 %v2883, 30
        %v2885 = vsub.s32 %v2881, %v2884
        %vm2886 = vcmp.lt.s32.totalorder %v2885, 0
        %v2887 = vsub.s32 0, %v2885
        %v2888 = vsel %vm2886, %v2887, %v2885
        %v2889 = vclz %v2888
        %v2890 = vsub.s32 %v2889, 2
        %vm2891 = vcmp.gt.s32.totalorder 0, %v2890
        %v2892 = vsel %vm2891, 0, %v2890
        %v2893 = vsub.s32 32, %v2892
        %v2894 = vshll.u32 %v2885, %v2892
        %v2895 = vshrl.u32 %v2877, %v2893
        %v2896 = vor.u32 %v2894, %v2895
        %v2897 = vsub.s32 4294967266, %v2892
        %v2898 = vadd.s32 %v2897, 127
        %v2899 = vshll.u32 %v2898, 23
        %v2900 = vor.u32 4788187, %v2899
        %v2901 = vand.u32 2147483647, %v2900
        %v2903 = vcvt.s32.f32 %v2896
        %v2904 = vmul.f32 %v2903, %v2901
        %v2905 = vxor.u32 %v2904, 2147483648
        %v2906 = vsel %vm2785, %v2905, %v2904
        %v2907 = vsub.s32 4, %v2883
        %v2908 = vsel %vm2785, %v2907, %v2883
        %v2909 = vsel %vm2784, %v464, %v2906
        %v2910 = vsel %vm2784, 0, %v2908
        %v2911 = vmul.f32 %v2909, %v2909
        %v2912 = vmul.f32 %v2911, -0.001358992
        %v2913 = vadd.f32 %v2912, 0.041655596
        %v2914 = vmul.f32 %v2911, %v2913
        %v2915 = vadd.f32 %v2914, -0.4999988
        %v2916 = vmul.f32 %v2911, %v2915
        %v2917 = vadd.f32 1.0, %v2916
        %v2918 = vmul.f32 %v2909, %v2909
        %v2919 = vmul.f32 %v2918, -0.00019511016
        %v2920 = vadd.f32 %v2919, 0.008332121
        %v2921 = vmul.f32 %v2918, %v2920
        %v2922 = vadd.f32 %v2921, -0.16666654
        %v2923 = vmul.f32 %v2918, %v2922
        %v2924 = vadd.f32 %v2923, 1.0
        %v2925 = vmul.f32 %v2924, %v2909
        %vm2926 = vweird.f32 %v464
        %v2927 = vand.u32 %v2910, 3
        %vm2928 = vcmp.lt.s32.totalorder %v2927, 2
        %vm2929 = vcmp.eq.s32.totalorder %v2927, 0
        %v2930 = vxor.u32 %v2925, 2147483648
        %v2931 = vsel %vm2929, %v2917, %v2930
        %vm2932 = vcmp.eq.s32.totalorder %v2927, 2
        %v2933 = vxor.u32 %v2917, 2147483648
        %v2934 = vsel %vm2932, %v2933, %v2925
        %v2935 = vsel %vm2928, %v2931, %v2934
        %v2936 = vsel %vm2926, nan, %v2935
        %v2937 = vsel %vm182, 1, 0
        %vm2938 = vcmp.eq.s32.totalorder %v2937, 1
        %v2939 = vsel %vm2938, %v619, %v1858
        %v2940 = vsel %vm2938, %v774, %v2012
        %v2941 = vsel %vm2938, %v929, %v2166
        %v2942 = vsel %vm2938, %v1084, %v2320
        %v2943 = vsel %vm2938, %v1239, %v2474
        %v2944 = vsel %vm2938, %v1394, %v2628
        %v2945 = vsel %vm2938, %v1549, %v2782
        %v2946 = vsel %vm2938, %v1704, %v2936
        %v2947 = vsel %vm132, 1, 0
        %vm2948 = vcmp.eq.s32.totalorder %v2947, 1
        %v2949 = vsel %vm2948, %v449, %v2939
        %v2950 = vsel %vm2948, %v450, %v2940
        %v2951 = vsel %vm2948, %v451, %v2941
        %v2952 = vsel %vm2948, %v452, %v2942
        %v2953 = vsel %vm2948, %v453, %v2943
        %v2954 = vsel %vm2948, %v454, %v2944
        %v2955 = vsel %vm2948, %v455, %v2945
        %v2956 = vsel %vm2948, %v456, %v2946
        %vm2957 = vcmask 1031168
        %2958 = vst.msk [vmem:[%s110] sm:$0xff] %vm2957, %v2949
        %2959 = vst.msk [vmem:[%s110 + $0x8] sm:$0xff] %vm2957, %v2950
        %2960 = vst.msk [vmem:[%s110 + $0x10] sm:$0xff] %vm2957, %v2951
        %2961 = vst.msk [vmem:[%s110 + $0x18] sm:$0xff] %vm2957, %v2952
        %2962 = vst.msk [vmem:[%s110 + $0x20] sm:$0xff] %vm2957, %v2953
        %2963 = vst.msk [vmem:[%s110 + $0x28] sm:$0xff] %vm2957, %v2954
        %2964 = vst.msk [vmem:[%s110 + $0x30] sm:$0xff] %vm2957, %v2955
        %2965 = vst.msk [vmem:[%s110 + $0x38] sm:$0xff] %vm2957, %v2956
        %s2966 = sand.u32 %s49, 1
        %s2967 = scalar_lea.sflag [#allocation3], %s2966
        %s2968 = sand.u32 %s49, 1
        %s2969 = smul.addr %s2968, 64
        %s2970 = scalar_lea.vmem [#allocation2], %s2969
        // Predicated region
        $region25: #{tpu_custom_call.1} parent=23 // pred_check
          %p2971 = pneg %p59
        $region26: #{tpu_custom_call.1} parent=23 // pred_check_branch
          %2973 = sbr.rel (%p2971) target = $region28
        $region27: #{tpu_custom_call.1} parent=23 // pred_region
          %s2974 = smul.u32 8, %s15
          %2976 = vsyncadd %s2967, 0
          %s2977 = smul.addr %s2974, 8
          %s2978 = scalar_lea.hbm %s1, %s2977
          %s2979 = sshll.u32 %s2970, 4
          %s2980 = int_to_ptr.vmem [resolvable:$true] %s2979
          %s2981 = sshll.u32 %s2978, 4
          %s2982 = int_to_ptr.hbm [resolvable:$true] %s2981
          %2987 = dma.vmem_to_hbm [thread:$0]  %s2980, 1024, %s2982, %s2967, 128, 128, 8
        $region28: #{tpu_custom_call.1} parent=23 // pred_fallthru
          _
      $region24: #{tpu_custom_call.1} parent=5 // pred_fallthru
        _
      %p2988 = scmp.le.s32.totalorder 2, %s10
      // Predicated region
      $region29: #{tpu_custom_call.1} parent=5 // pred_check
        %p2989 = pneg %p2988
      $region30: #{tpu_custom_call.1} parent=5 // pred_check_branch
        %2991 = sbr.rel (%p2989) target = $region32
      $region31: #{tpu_custom_call.1} parent=5 // pred_region
        %s2992 = ssub.s32 %s10, 2
        // Predicated region
        $region33: #{tpu_custom_call.1} parent=31 // pred_check
          %p2993 = pneg %p65
        $region34: #{tpu_custom_call.1} parent=31 // pred_check_branch
          %2995 = sbr.rel (%p2993) target = $region36
        $region35: #{tpu_custom_call.1} parent=31 // pred_region
          %s2996 = sand.u32 %s50, 1
          %s2997 = scalar_lea.sflag [#allocation3], %s2996
          %s2998 = sand.u32 %s50, 1
          %s2999 = smul.addr %s2998, 64
          %s3000 = scalar_lea.vmem [#allocation2], %s2999
          %3002 = dma.done %s2997, 1024
        $region36: #{tpu_custom_call.1} parent=31 // pred_fallthru
          _
      $region32: #{tpu_custom_call.1} parent=5 // pred_fallthru
        _
    $region6: #{tpu_custom_call.1} parent=1 // loop_footer
      %s14 = sadd.s32 1, %s10
    $region7: #{tpu_custom_call.1} parent=1 // loop_footer_branch
      %9 = sbr.rel target = $region3
    $region8: #{tpu_custom_call.1} parent=1 // loop_exit
      _
    %3003 = vsyncpa [#allocation3], 1
    %s3004 = scalar_lea.sflag [#allocation3], 1
    %3005 = vsyncpa %s3004, 1

</llo_original>
